<compile_context>
chip_gen: v7x
topology: tpu7x:2x2x1
jax: 0.10.0
libtpu: 0.0.40
codegen_flags: <defaults>
</compile_context>

<pallas_src>
import functools

import jax
import jax.numpy as jnp
import numpy as np
from jax.experimental import pallas as pl
from jax.experimental.pallas import tpu as pltpu

filter_sizes = [1, 2, 3, 4, 5]
num_filters = [128, 128, 128, 128, 128]

_LANE = 128
_SUBLANE = 8


def _round_up(x, m):
    return (x + m - 1) // m * m


def _vmem_capacity_bytes():
    try:
        cap = getattr(pltpu.get_tpu_info(), "vmem_capacity_bytes", None)
        if cap:
            return int(cap)
    except Exception:
        pass
    return 128 << 20


# ---------------------------------------------------------------------------
# Single fused kernel (time-major activations):
#   conv (one big MXU matmul over all taps) -> shifted-tap accumulation
#   -> max-pool over time (VPU) -> bias+ReLU -> Linear -> ReLU -> Linear
# ---------------------------------------------------------------------------
def _textcnn_kernel(emb_ref, wslab_ref, bslab_ref, w1_ref, b1_ref,
                    w2_ref, b2_ref, o_ref, *, banks, L):
    # emb_ref : (L, TB, E)   time-major so every tap shift slices the LEADING
    #                        axis (whole (TB, n) tiles, no sublane retile).
    # wslab_ref: (E, n_tap_cols)   bslab_ref: (1, F)
    # w1_ref  : (F, H)   b1_ref: (1, H)   w2_ref: (H, OUTP)   b2_ref: (1, OUTP)
    # o_ref   : (TB, OUTP)
    emb = emb_ref[...]
    _, TB, E = emb.shape

    # One lane-dense matmul covering every tap of every filter bank;
    # L*TB folded into M keeps the MXU systolic array full (free reshape:
    # TB is sublane-aligned by construction).
    y = jnp.dot(emb.reshape(L * TB, E), wslab_ref[...],
                preferred_element_type=jnp.float32)
    y = y.reshape(L, TB, -1)

    # Static per-bank shifted-tap accumulation + max over time.
    # Leading-axis slices + lane slices at multiples of 128 -> no retiles;
    # jnp.max over axis 0 lowers to T-1 elementwise maxes on the VPU.
    pooled = []
    for f, n, tap_off in banks:
        T = L - f + 1
        acc = y[0:T, :, tap_off:tap_off + n]
        for j in range(1, f):
            acc = acc + y[j:j + T, :, tap_off + j * n:tap_off + (j + 1) * n]
        pooled.append(jnp.max(acc, axis=0))                  # (TB, n)
    feat = jnp.concatenate(pooled, axis=-1)                  # (TB, F)
    # bias + ReLU after the max (exact: bias const over time, ReLU monotone).
    feat = jnp.maximum(feat + bslab_ref[...], 0.0)

    # MLP head (dropout p=0.0 in the module -> identity).
    h = jnp.dot(feat.astype(w1_ref.dtype), w1_ref[...],
                preferred_element_type=jnp.float32) + b1_ref[...]
    h = jnp.maximum(h, 0.0)
    o_ref[...] = jnp.dot(h.astype(w2_ref.dtype), w2_ref[...],
                         preferred_element_type=jnp.float32) + b2_ref[...]


# ---------------------------------------------------------------------------
# Parameter packing: one MXU-friendly weight slab for all conv taps
# (unpadded K = E), lane-padded final logits, bf16 MXU operands by default.
# ---------------------------------------------------------------------------
def prepare_fused_params(params, compute_dtype=jnp.bfloat16):
    E = params["emb"].shape[1]

    banks, taps, biases = [], [], []
    tap_off = 0
    for f, (w, b) in zip(filter_sizes, params["convs"]):
        n = w.shape[-1]
        banks.append((f, n, tap_off))
        for j in range(f):
            taps.append(w[j])                       # (E, n)
        biases.append(b)                            # (1, n)
        tap_off += f * n

    wslab = jnp.concatenate(taps, axis=1)           # (E, n_tap_cols), no K pad
    bslab = jnp.concatenate(biases, axis=1)         # (1, feature_dim)

    hidden = params["fc1_w"].shape[1]
    out_dim = params["fc2_w"].shape[1]
    outp = _round_up(out_dim, _LANE)                # lane-dense output stores
    w2 = jnp.pad(params["fc2_w"], ((0, 0), (0, outp - out_dim)))
    b2 = jnp.pad(params["fc2_b"], ((0, 0), (0, outp - out_dim)))

    fused = {
        "emb": params["emb"].astype(compute_dtype),          # (V, E) unpadded
        "wslab": wslab.astype(compute_dtype),
        "bslab": bslab.astype(jnp.float32),
        "fc1_w": params["fc1_w"].astype(compute_dtype),
        "fc1_b": params["fc1_b"].astype(jnp.float32),
        "fc2_w": w2.astype(compute_dtype),
        "fc2_b": b2.astype(jnp.float32),
    }
    meta = {
        "banks": tuple(banks),
        "E": E,
        "outp": outp,
        "out_dim": out_dim,
        "n_tap_cols": tap_off,
        "feature_dim": sum(n for _, n, _ in banks),
        "hidden": hidden,
    }
    return fused, meta


def _batch_tile(B, L, E, n_tap_cols, emb_bytes, vmem_budget_bytes):
    # Per-TB-row VMEM: f32 (L, TB, n_tap_cols) matmul result, a few live
    # per-bank accumulator slices, double-buffered emb block, out block.
    per_tb = (L * n_tap_cols * 4
              + 3 * L * _LANE * 4
              + 2 * L * E * emb_bytes
              + 2 * _LANE * 4)
    fixed = 4 << 20            # double-buffered grid-constant weights + slack
    max_tb = max(1, (vmem_budget_bytes - fixed) // per_tb)
    max_tb = max(_SUBLANE, (max_tb // _SUBLANE) * _SUBLANE)
    # Always sublane-aligned tiles (free reshapes in-kernel); cap raised to 512
    # so large batches on v5e/v6e amortize per-step overhead.
    tb = min(_round_up(B, _SUBLANE), 512, max_tb)
    # Keep >= 2 grid steps when the batch allows it, so the "parallel" axis
    # actually feeds both v7x TensorCores.
    if B >= 2 * _SUBLANE:
        tb = min(tb, _round_up((B + 1) // 2, _SUBLANE))
    return tb


# ---------------------------------------------------------------------------
# Full forward
# ---------------------------------------------------------------------------
def textcnn_forward(ids, fused, meta):
    B, L = ids.shape
    E = meta["E"]
    outp = meta["outp"]
    n_tap_cols = meta["n_tap_cols"]
    feat_dim, hidden = meta["feature_dim"], meta["hidden"]
    if L < max(filter_sizes):
        raise ValueError(
            f"sequence length {L} < max filter size {max(filter_sizes)}: "
            "conv output would be empty (same failure as the PyTorch module)")

    emb_bytes = jnp.dtype(fused["emb"].dtype).itemsize
    vmem_cap = _vmem_capacity_bytes()                 # 64 MiB v7x, 128 MiB v5e/v6e
    tb = _batch_tile(B, L, E, n_tap_cols, emb_bytes, int(vmem_cap * 0.5))
    Bp = _round_up(B, tb)
    if Bp != B:
        ids = jnp.pad(ids, ((0, Bp - B), (0, 0)))     # padded rows sliced off below

    # TODO(synk): for small vocabularies the embedding row-gather could be fused
    # into the kernel (VMEM-resident table); kept as an XLA gather here so the
    # kernel stays valid for large vocab tables.  Gathering with ids.T directly
    # produces the time-major (L, Bp, E) layout the kernel wants — no transpose.
    emb = jnp.take(fused["emb"], ids.T, axis=0)       # (L, Bp, E), bf16, unpadded

    kernel = functools.partial(_textcnn_kernel, banks=meta["banks"], L=L)
    rep = lambda i: (0, 0)                            # weights resident across grid
    logits_p = pl.pallas_call(
        kernel,
        out_shape=jax.ShapeDtypeStruct((Bp, outp), jnp.float32),
        grid_spec=pltpu.PrefetchScalarGridSpec(
            num_scalar_prefetch=0,
            grid=(Bp // tb,),
            in_specs=[
                pl.BlockSpec((L, tb, E), lambda i: (0, i, 0)),
                pl.BlockSpec((E, n_tap_cols), rep),
                pl.BlockSpec((1, feat_dim), rep),
                pl.BlockSpec((feat_dim, hidden), rep),
                pl.BlockSpec((1, hidden), rep),
                pl.BlockSpec((hidden, outp), rep),
                pl.BlockSpec((1, outp), rep),
            ],
            out_specs=pl.BlockSpec((tb, outp), lambda i: (i, 0)),
        ),
        compiler_params=pltpu.CompilerParams(
            dimension_semantics=("parallel",),        # megacore over batch tiles
            vmem_limit_bytes=min(int(vmem_cap * 0.75), 100 * 1024 * 1024),
        ),
    )(emb, fused["wslab"], fused["bslab"], fused["fc1_w"], fused["fc1_b"],
      fused["fc2_w"], fused["fc2_b"])
    return logits_p[:B, :meta["out_dim"]]


# ---------------------------------------------------------------------------
# Pure-JAX reference (f32, pinned precision) for correctness checking
# ---------------------------------------------------------------------------
def ref_forward(ids, params):
    hp = jax.lax.Precision.HIGHEST
    emb = jnp.take(params["emb"], ids, axis=0)
    L = emb.shape[1]
    pools = []
    for f, (w, b) in zip(filter_sizes, params["convs"]):
        T = L - f + 1
        conv = sum(
            jnp.einsum("ble,en->bln", emb[:, j:j + T, :], w[j], precision=hp)
            for j in range(f)
        ) + b[None, :, :]
        pools.append(jnp.max(jax.nn.relu(conv), axis=1))
    feat = jnp.concatenate(pools, axis=1)
    h = jax.nn.relu(jnp.dot(feat, params["fc1_w"], precision=hp) + params["fc1_b"])
    return jnp.dot(h, params["fc2_w"], precision=hp) + params["fc2_b"]


def init_params(key, vocab_size, embed_dim):
    feature_dim = sum(num_filters)
    hidden = feature_dim // 2
    keys = jax.random.split(key, 4 + 2 * len(filter_sizes))
    params = {
        "emb": jax.random.normal(keys[0], (vocab_size, embed_dim), jnp.float32)
        * (embed_dim ** -0.5),
        "convs": [],
        "fc1_w": jax.random.normal(keys[1], (feature_dim, hidden), jnp.float32) * 0.05,
        "fc1_b": jax.random.normal(keys[2], (1, hidden), jnp.float32) * 0.05,
        "fc2_w": jax.random.normal(keys[3], (hidden, 2), jnp.float32) * 0.05,
        "fc2_b": jnp.zeros((1, 2), jnp.float32),
    }
    for i, (f, n) in enumerate(zip(filter_sizes, num_filters)):
        kw, kb = keys[4 + 2 * i], keys[5 + 2 * i]
        w = jax.random.normal(kw, (f, embed_dim, n), jnp.float32) * 0.1
        b = jax.random.normal(kb, (1, n), jnp.float32) * 0.1
        params["convs"].append((w, b))
    return params


if __name__ == "__main__":
    B, L, E, V = 2, 8, 32, 50  # small shapes: batch=2, seq=8, embed=32, vocab=50

    key = jax.random.PRNGKey(0)
    k_param, k_ids = jax.random.split(key)
    params = init_params(k_param, V, E)
    ids = jax.random.randint(k_ids, (B, L), 0, V, dtype=jnp.int32)

    ref = jax.block_until_ready(ref_forward(ids, params))

    # f32 MXU operands: tight check against the pure-JAX reference.
    fused32, meta32 = prepare_fused_params(params, compute_dtype=jnp.float32)
    out32 = jax.block_until_ready(textcnn_forward(ids, fused32, meta32))
    assert out32.shape == (B, 2), out32.shape
    np.testing.assert_allclose(np.asarray(out32), np.asarray(ref),
                               atol=2e-4, rtol=2e-4)

    # bf16 MXU operands (default; f32 accumulation, f32 epilogue): loose check.
    fusedbf, metabf = prepare_fused_params(params)          # bf16 default
    outbf = jax.block_until_ready(textcnn_forward(ids, fusedbf, metabf))
    assert outbf.shape == (B, 2), outbf.shape
    np.testing.assert_allclose(np.asarray(outbf), np.asarray(ref),
                               atol=5e-2, rtol=5e-2)

    print("KERNEL_OK")
</pallas_src>

<mosaic_0001>
module attributes {stable_mosaic.version = 11 : i64} {
  func.func @_textcnn_kernel(%arg0: i32, %arg1: memref<8x8x32xf32, #tpu.memory_space<vmem>>, %arg2: memref<32x1920xf32, #tpu.memory_space<vmem>>, %arg3: memref<1x640xf32, #tpu.memory_space<vmem>>, %arg4: memref<640x320xf32, #tpu.memory_space<vmem>>, %arg5: memref<1x320xf32, #tpu.memory_space<vmem>>, %arg6: memref<320x128xf32, #tpu.memory_space<vmem>>, %arg7: memref<1x128xf32, #tpu.memory_space<vmem>>, %arg8: memref<8x128xf32, #tpu.memory_space<vmem>>) attributes {dimension_semantics = [#tpu.dimension_semantics<parallel>], iteration_bounds = array<i64: 1>, scalar_prefetch = 0 : i64, scratch_operands = 0 : i64, tpu.core_type = #tpu.core_type<tc>, window_params = [{transform_indices = @transform_0, window_bounds = array<i64: 8, 8, 32>}, {pipeline_mode = #tpu.pipeline_mode<synchronous>, transform_indices = @transform_1, window_bounds = array<i64: 32, 1920>}, {pipeline_mode = #tpu.pipeline_mode<synchronous>, transform_indices = @transform_2, window_bounds = array<i64: 1, 640>}, {pipeline_mode = #tpu.pipeline_mode<synchronous>, transform_indices = @transform_3, window_bounds = array<i64: 640, 320>}, {pipeline_mode = #tpu.pipeline_mode<synchronous>, transform_indices = @transform_4, window_bounds = array<i64: 1, 320>}, {pipeline_mode = #tpu.pipeline_mode<synchronous>, transform_indices = @transform_5, window_bounds = array<i64: 320, 128>}, {pipeline_mode = #tpu.pipeline_mode<synchronous>, transform_indices = @transform_6, window_bounds = array<i64: 1, 128>}, {transform_indices = @transform_7, window_bounds = array<i64: 8, 128>}]} {
    %c0 = arith.constant 0 : index
    %c0_0 = arith.constant 0 : index
    %c0_1 = arith.constant 0 : index
    %0 = vector.load %arg1[%c0, %c0_0, %c0_1] : memref<8x8x32xf32, #tpu.memory_space<vmem>>, vector<8x8x32xf32>
    %1 = vector.shape_cast %0 : vector<8x8x32xf32> to vector<64x32xf32>
    %c0_2 = arith.constant 0 : index
    %c0_3 = arith.constant 0 : index
    %2 = vector.load %arg2[%c0_2, %c0_3] : memref<32x1920xf32, #tpu.memory_space<vmem>>, vector<32x1920xf32>
    %cst = arith.constant dense<0.000000e+00> : vector<64x1920xf32>
    %3 = tpu.matmul %1, %2, %cst {dimension_numbers = #tpu.dot_dimension_numbers<[1], [0], [0], [1], [0, 0, 1, 1], [], []>} : vector<64x32xf32>, vector<32x1920xf32>, vector<64x1920xf32> -> vector<64x1920xf32>
    %4 = vector.shape_cast %3 : vector<64x1920xf32> to vector<8x8x1920xf32>
    %5 = vector.extract_strided_slice %4 {offsets = [0, 0, 0], sizes = [8, 8, 128], strides = [1, 1, 1]} : vector<8x8x1920xf32> to vector<8x8x128xf32>
    %cst_4 = arith.constant dense<0xFF800000> : vector<8x128xf32>
    %6 = vector.multi_reduction <maximumf>, %5, %cst_4 [0] : vector<8x8x128xf32> to vector<8x128xf32>
    %7 = vector.extract_strided_slice %4 {offsets = [0, 0, 128], sizes = [7, 8, 128], strides = [1, 1, 1]} : vector<8x8x1920xf32> to vector<7x8x128xf32>
    %8 = vector.extract_strided_slice %4 {offsets = [1, 0, 256], sizes = [7, 8, 128], strides = [1, 1, 1]} : vector<8x8x1920xf32> to vector<7x8x128xf32>
    %9 = arith.addf %7, %8 : vector<7x8x128xf32>
    %cst_5 = arith.constant dense<0xFF800000> : vector<8x128xf32>
    %10 = vector.multi_reduction <maximumf>, %9, %cst_5 [0] : vector<7x8x128xf32> to vector<8x128xf32>
    %11 = vector.extract_strided_slice %4 {offsets = [0, 0, 384], sizes = [6, 8, 128], strides = [1, 1, 1]} : vector<8x8x1920xf32> to vector<6x8x128xf32>
    %12 = vector.extract_strided_slice %4 {offsets = [1, 0, 512], sizes = [6, 8, 128], strides = [1, 1, 1]} : vector<8x8x1920xf32> to vector<6x8x128xf32>
    %13 = arith.addf %11, %12 : vector<6x8x128xf32>
    %14 = vector.extract_strided_slice %4 {offsets = [2, 0, 640], sizes = [6, 8, 128], strides = [1, 1, 1]} : vector<8x8x1920xf32> to vector<6x8x128xf32>
    %15 = arith.addf %13, %14 : vector<6x8x128xf32>
    %cst_6 = arith.constant dense<0xFF800000> : vector<8x128xf32>
    %16 = vector.multi_reduction <maximumf>, %15, %cst_6 [0] : vector<6x8x128xf32> to vector<8x128xf32>
    %17 = vector.extract_strided_slice %4 {offsets = [0, 0, 768], sizes = [5, 8, 128], strides = [1, 1, 1]} : vector<8x8x1920xf32> to vector<5x8x128xf32>
    %18 = vector.extract_strided_slice %4 {offsets = [1, 0, 896], sizes = [5, 8, 128], strides = [1, 1, 1]} : vector<8x8x1920xf32> to vector<5x8x128xf32>
    %19 = arith.addf %17, %18 : vector<5x8x128xf32>
    %20 = vector.extract_strided_slice %4 {offsets = [2, 0, 1024], sizes = [5, 8, 128], strides = [1, 1, 1]} : vector<8x8x1920xf32> to vector<5x8x128xf32>
    %21 = arith.addf %19, %20 : vector<5x8x128xf32>
    %22 = vector.extract_strided_slice %4 {offsets = [3, 0, 1152], sizes = [5, 8, 128], strides = [1, 1, 1]} : vector<8x8x1920xf32> to vector<5x8x128xf32>
    %23 = arith.addf %21, %22 : vector<5x8x128xf32>
    %cst_7 = arith.constant dense<0xFF800000> : vector<8x128xf32>
    %24 = vector.multi_reduction <maximumf>, %23, %cst_7 [0] : vector<5x8x128xf32> to vector<8x128xf32>
    %25 = vector.extract_strided_slice %4 {offsets = [0, 0, 1280], sizes = [4, 8, 128], strides = [1, 1, 1]} : vector<8x8x1920xf32> to vector<4x8x128xf32>
    %26 = vector.extract_strided_slice %4 {offsets = [1, 0, 1408], sizes = [4, 8, 128], strides = [1, 1, 1]} : vector<8x8x1920xf32> to vector<4x8x128xf32>
    %27 = arith.addf %25, %26 : vector<4x8x128xf32>
    %28 = vector.extract_strided_slice %4 {offsets = [2, 0, 1536], sizes = [4, 8, 128], strides = [1, 1, 1]} : vector<8x8x1920xf32> to vector<4x8x128xf32>
    %29 = arith.addf %27, %28 : vector<4x8x128xf32>
    %30 = vector.extract_strided_slice %4 {offsets = [3, 0, 1664], sizes = [4, 8, 128], strides = [1, 1, 1]} : vector<8x8x1920xf32> to vector<4x8x128xf32>
    %31 = arith.addf %29, %30 : vector<4x8x128xf32>
    %32 = vector.extract_strided_slice %4 {offsets = [4, 0, 1792], sizes = [4, 8, 128], strides = [1, 1, 1]} : vector<8x8x1920xf32> to vector<4x8x128xf32>
    %33 = arith.addf %31, %32 : vector<4x8x128xf32>
    %cst_8 = arith.constant dense<0xFF800000> : vector<8x128xf32>
    %34 = vector.multi_reduction <maximumf>, %33, %cst_8 [0] : vector<4x8x128xf32> to vector<8x128xf32>
    %35 = tpu.concatenate %6, %10, %16, %24, %34 in 1 : vector<8x128xf32>, vector<8x128xf32>, vector<8x128xf32>, vector<8x128xf32>, vector<8x128xf32> -> vector<8x640xf32>
    %c0_9 = arith.constant 0 : index
    %c0_10 = arith.constant 0 : index
    %36 = vector.load %arg3[%c0_9, %c0_10] : memref<1x640xf32, #tpu.memory_space<vmem>>, vector<1x640xf32>
    %37 = vector.broadcast %36 : vector<1x640xf32> to vector<8x640xf32>
    %38 = arith.addf %35, %37 : vector<8x640xf32>
    %cst_11 = arith.constant 0.000000e+00 : f32
    %39 = vector.broadcast %cst_11 : f32 to vector<8x640xf32>
    %40 = arith.maximumf %38, %39 : vector<8x640xf32>
    %c0_12 = arith.constant 0 : index
    %c0_13 = arith.constant 0 : index
    %41 = vector.load %arg4[%c0_12, %c0_13] : memref<640x320xf32, #tpu.memory_space<vmem>>, vector<640x320xf32>
    %cst_14 = arith.constant dense<0.000000e+00> : vector<8x320xf32>
    %42 = tpu.matmul %40, %41, %cst_14 {dimension_numbers = #tpu.dot_dimension_numbers<[1], [0], [0], [1], [0, 0, 1, 1], [], []>} : vector<8x640xf32>, vector<640x320xf32>, vector<8x320xf32> -> vector<8x320xf32>
    %c0_15 = arith.constant 0 : index
    %c0_16 = arith.constant 0 : index
    %43 = vector.load %arg5[%c0_15, %c0_16] : memref<1x320xf32, #tpu.memory_space<vmem>>, vector<1x320xf32>
    %44 = vector.broadcast %43 : vector<1x320xf32> to vector<8x320xf32>
    %45 = arith.addf %42, %44 : vector<8x320xf32>
    %cst_17 = arith.constant 0.000000e+00 : f32
    %46 = vector.broadcast %cst_17 : f32 to vector<8x320xf32>
    %47 = arith.maximumf %45, %46 : vector<8x320xf32>
    %c0_18 = arith.constant 0 : index
    %c0_19 = arith.constant 0 : index
    %48 = vector.load %arg6[%c0_18, %c0_19] : memref<320x128xf32, #tpu.memory_space<vmem>>, vector<320x128xf32>
    %cst_20 = arith.constant dense<0.000000e+00> : vector<8x128xf32>
    %49 = tpu.matmul %47, %48, %cst_20 {dimension_numbers = #tpu.dot_dimension_numbers<[1], [0], [0], [1], [0, 0, 1, 1], [], []>} : vector<8x320xf32>, vector<320x128xf32>, vector<8x128xf32> -> vector<8x128xf32>
    %c0_21 = arith.constant 0 : index
    %c0_22 = arith.constant 0 : index
    %50 = vector.load %arg7[%c0_21, %c0_22] : memref<1x128xf32, #tpu.memory_space<vmem>>, vector<1x128xf32>
    %51 = vector.broadcast %50 : vector<1x128xf32> to vector<8x128xf32>
    %52 = arith.addf %49, %51 : vector<8x128xf32>
    %c0_23 = arith.constant 0 : index
    %c0_24 = arith.constant 0 : index
    %53 = vector.load %arg8[%c0_23, %c0_24] : memref<8x128xf32, #tpu.memory_space<vmem>>, vector<8x128xf32>
    tpu.vector_store %arg8[%c0_23, %c0_24], %52 {strides = array<i32>} : memref<8x128xf32, #tpu.memory_space<vmem>>, vector<8x128xf32>,
    return
  }
  func.func @transform_0(%arg0: i32) -> (i32, i32, i32) {
    %c0_i32 = arith.constant 0 : i32
    %c0_i32_0 = arith.constant 0 : i32
    %c0_i32_1 = arith.constant 0 : i32
    return %c0_i32, %arg0, %c0_i32_0 : i32, i32, i32
  }
  func.func @transform_1(%arg0: i32) -> (i32, i32) {
    %c0_i32 = arith.constant 0 : i32
    %c0_i32_0 = arith.constant 0 : i32
    %c0_i32_1 = arith.constant 0 : i32
    return %c0_i32, %c0_i32_0 : i32, i32
  }
  func.func @transform_2(%arg0: i32) -> (i32, i32) {
    %c0_i32 = arith.constant 0 : i32
    %c0_i32_0 = arith.constant 0 : i32
    %c0_i32_1 = arith.constant 0 : i32
    return %c0_i32, %c0_i32_0 : i32, i32
  }
  func.func @transform_3(%arg0: i32) -> (i32, i32) {
    %c0_i32 = arith.constant 0 : i32
    %c0_i32_0 = arith.constant 0 : i32
    %c0_i32_1 = arith.constant 0 : i32
    return %c0_i32, %c0_i32_0 : i32, i32
  }
  func.func @transform_4(%arg0: i32) -> (i32, i32) {
    %c0_i32 = arith.constant 0 : i32
    %c0_i32_0 = arith.constant 0 : i32
    %c0_i32_1 = arith.constant 0 : i32
    return %c0_i32, %c0_i32_0 : i32, i32
  }
  func.func @transform_5(%arg0: i32) -> (i32, i32) {
    %c0_i32 = arith.constant 0 : i32
    %c0_i32_0 = arith.constant 0 : i32
    %c0_i32_1 = arith.constant 0 : i32
    return %c0_i32, %c0_i32_0 : i32, i32
  }
  func.func @transform_6(%arg0: i32) -> (i32, i32) {
    %c0_i32 = arith.constant 0 : i32
    %c0_i32_0 = arith.constant 0 : i32
    %c0_i32_1 = arith.constant 0 : i32
    return %c0_i32, %c0_i32_0 : i32, i32
  }
  func.func @transform_7(%arg0: i32) -> (i32, i32) {
    %c0_i32 = arith.constant 0 : i32
    %c0_i32_0 = arith.constant 0 : i32
    return %arg0, %c0_i32 : i32, i32
  }
}

</mosaic_0001>

<llo_original>
// kernel: tpu_custom_call.1
$region0: #{tpu_custom_call.1}
  #allocation0 [shape = 'u32[]', space=smem, size = 0x4, offset = 0x4, fixed_abs, tag = 'smem constant byte address 0x4 - core index']
  #allocation1 [shape = 'u32[144,128]{1,0:T(1,128)}', space=vmem, size = 0x12000, scoped, tag = 'internal scratch']
  %s0 = inlined_call_operand.hbm [shape: f32[8,8,32], index: 0, kind: input, shape index: {}]
  %s1 = inlined_call_operand.hbm [shape: f32[32,1920], index: 1, kind: input, shape index: {}]
  %s2 = inlined_call_operand.hbm [shape: f32[1,640], index: 2, kind: input, shape index: {}]
  %s3 = inlined_call_operand.hbm [shape: f32[640,320], index: 3, kind: input, shape index: {}]
  %s4 = inlined_call_operand.hbm [shape: f32[1,320], index: 4, kind: input, shape index: {}]
  %s5 = inlined_call_operand.hbm [shape: f32[320,128], index: 5, kind: input, shape index: {}]
  %s6 = inlined_call_operand.hbm [shape: f32[1,128], index: 6, kind: input, shape index: {}]
  %s7 = inlined_call_operand.hbm [shape: f32[8,128], index: 7, kind: output, shape index: {}]
  %s8 = sld [smem:[#allocation0]]
  $region66: #{tpu_custom_call.1} parent=0
    _
  %s10 = ssub.s32 1, %s8
  %s11 = scalar_select 0, %s10, %s8
  $region1: #{tpu_custom_call.1} parent=0
    #allocation2 [shape = 'u8[32768]{0}', space=vmem, size = 0x8000, scoped, tag = 'input window, operand 0, single buffered']
    #allocation3 [shape = 's32[1]{0}', space=sflag, size = 0x4, scoped, tag = 'scoped memory for tpu_custom_call.1']
    #allocation4 [shape = 's32[1]{0}', space=sflag, size = 0x4, scoped, tag = 'scoped memory for tpu_custom_call.1']
    #allocation5 [shape = 'u8[245760]{0}', space=vmem, size = 0x3c000, scoped, tag = 'input window, operand 1, single buffered']
    #allocation6 [shape = 's32[1]{0}', space=sflag, size = 0x4, scoped, tag = 'scoped memory for tpu_custom_call.1']
    #allocation7 [shape = 'u8[2560]{0}', space=vmem, size = 0xc00, scoped, tag = 'input window, operand 2, single buffered']
    #allocation8 [shape = 'u8[983040]{0}', space=vmem, size = 0xf0000, scoped, tag = 'input window, operand 3, single buffered']
    #allocation9 [shape = 's32[1]{0}', space=sflag, size = 0x4, scoped, tag = 'scoped memory for tpu_custom_call.1']
    #allocation10 [shape = 'u8[1536]{0}', space=vmem, size = 0x800, scoped, tag = 'input window, operand 4, single buffered']
    #allocation11 [shape = 'u8[163840]{0}', space=vmem, size = 0x28000, scoped, tag = 'input window, operand 5, single buffered']
    #allocation12 [shape = 's32[1]{0}', space=sflag, size = 0x4, scoped, tag = 'scoped memory for tpu_custom_call.1']
    #allocation13 [shape = 'u8[512]{0}', space=vmem, size = 0x400, scoped, tag = 'input window, operand 6, single buffered']
    #allocation14 [shape = 'u8[4096]{0}', space=vmem, size = 0x1000, scoped, tag = 'output window, operand 0, single buffered']
    %12 = vsyncpa [#allocation3], 0
    %13 = vsyncpa [#allocation6], 0
    %14 = vsyncpa [#allocation9], 0
    %15 = vsyncpa [#allocation12], 0
    %16 = vsyncpa [#allocation4], 0
    // Predicated region
    $region2: #{tpu_custom_call.1} parent=1 // pred_check
      _
    $region3: #{tpu_custom_call.1} parent=1 // pred_check_branch
      %18 = sbr.rel (0) target = $region5
    $region4: #{tpu_custom_call.1} parent=1 // pred_region
      %s20 = ssub.s32 1024, 1024
      %21 = vsyncadd [#allocation3], %s20
      %s22 = sshll.u32 [#allocation2], 4
      %s23 = int_to_ptr.vmem [resolvable:$true] %s22
      %28 = dma.hbm_to_vmem [thread:$0]  %s0, 1024, %s23, [#allocation3], 128, 128, 8
    $region5: #{tpu_custom_call.1} parent=1 // pred_fallthru
      _
    // Predicated region
    $region6: #{tpu_custom_call.1} parent=1 // pred_check
      _
    $region7: #{tpu_custom_call.1} parent=1 // pred_check_branch
      %30 = sbr.rel (0) target = $region9
    $region8: #{tpu_custom_call.1} parent=1 // pred_region
      %s32 = ssub.s32 7680, 7680
      %33 = vsyncadd [#allocation6], %s32
      %s34 = sshll.u32 [#allocation5], 4
      %s35 = int_to_ptr.vmem [resolvable:$true] %s34
      %40 = dma.hbm_to_vmem [thread:$0]  %s1, 7680, %s35, [#allocation6], 1920, 1920, 120
    $region9: #{tpu_custom_call.1} parent=1 // pred_fallthru
      _
    // Predicated region
    $region10: #{tpu_custom_call.1} parent=1 // pred_check
      _
    $region11: #{tpu_custom_call.1} parent=1 // pred_check_branch
      %42 = sbr.rel (0) target = $region13
    $region12: #{tpu_custom_call.1} parent=1 // pred_region
      %s44 = ssub.s32 80, 80
      %45 = vsyncadd [#allocation6], %s44
      %s47 = sshll.u32 [#allocation7], 4
      %s48 = int_to_ptr.vmem [resolvable:$true] %s47
      %50 = dma.hbm_to_vmem [thread:$0]  %s2, 80, %s48, [#allocation6]
    $region13: #{tpu_custom_call.1} parent=1 // pred_fallthru
      _
    // Predicated region
    $region14: #{tpu_custom_call.1} parent=1 // pred_check
      _
    $region15: #{tpu_custom_call.1} parent=1 // pred_check_branch
      %52 = sbr.rel (0) target = $region17
    $region16: #{tpu_custom_call.1} parent=1 // pred_region
      %s54 = ssub.s32 30720, 30720
      %55 = vsyncadd [#allocation9], %s54
      %s56 = sshll.u32 [#allocation8], 4
      %s57 = int_to_ptr.vmem [resolvable:$true] %s56
      %62 = dma.hbm_to_vmem [thread:$0]  %s3, 30720, %s57, [#allocation9], 384, 384, 24
    $region17: #{tpu_custom_call.1} parent=1 // pred_fallthru
      _
    // Predicated region
    $region18: #{tpu_custom_call.1} parent=1 // pred_check
      _
    $region19: #{tpu_custom_call.1} parent=1 // pred_check_branch
      %64 = sbr.rel (0) target = $region21
    $region20: #{tpu_custom_call.1} parent=1 // pred_region
      %s66 = ssub.s32 48, 48
      %67 = vsyncadd [#allocation9], %s66
      %s69 = sshll.u32 [#allocation10], 4
      %s70 = int_to_ptr.vmem [resolvable:$true] %s69
      %72 = dma.hbm_to_vmem [thread:$0]  %s4, 48, %s70, [#allocation9]
    $region21: #{tpu_custom_call.1} parent=1 // pred_fallthru
      _
    // Predicated region
    $region22: #{tpu_custom_call.1} parent=1 // pred_check
      _
    $region23: #{tpu_custom_call.1} parent=1 // pred_check_branch
      %74 = sbr.rel (0) target = $region25
    $region24: #{tpu_custom_call.1} parent=1 // pred_region
      %s76 = ssub.s32 5120, 5120
      %77 = vsyncadd [#allocation12], %s76
      %s78 = sshll.u32 [#allocation11], 4
      %s79 = int_to_ptr.vmem [resolvable:$true] %s78
      %84 = dma.hbm_to_vmem [thread:$0]  %s5, 5120, %s79, [#allocation12], 128, 128, 8
    $region25: #{tpu_custom_call.1} parent=1 // pred_fallthru
      _
    // Predicated region
    $region26: #{tpu_custom_call.1} parent=1 // pred_check
      _
    $region27: #{tpu_custom_call.1} parent=1 // pred_check_branch
      %86 = sbr.rel (0) target = $region29
    $region28: #{tpu_custom_call.1} parent=1 // pred_region
      %s88 = ssub.s32 16, 16
      %89 = vsyncadd [#allocation12], %s88
      %s91 = sshll.u32 [#allocation13], 4
      %s92 = int_to_ptr.vmem [resolvable:$true] %s91
      %94 = dma.hbm_to_vmem [thread:$0]  %s6, 16, %s92, [#allocation12]
    $region29: #{tpu_custom_call.1} parent=1 // pred_fallthru
      _
    // Predicated region
    $region30: #{tpu_custom_call.1} parent=1 // pred_check
      _
    $region31: #{tpu_custom_call.1} parent=1 // pred_check_branch
      %96 = sbr.rel (0) target = $region33
    $region32: #{tpu_custom_call.1} parent=1 // pred_region
      %97 = dma.done [#allocation3], 1024
    $region33: #{tpu_custom_call.1} parent=1 // pred_fallthru
      _
    // Predicated region
    $region34: #{tpu_custom_call.1} parent=1 // pred_check
      _
    $region35: #{tpu_custom_call.1} parent=1 // pred_check_branch
      %99 = sbr.rel (0) target = $region37
    $region36: #{tpu_custom_call.1} parent=1 // pred_region
      %100 = dma.done [#allocation6], 7680
    $region37: #{tpu_custom_call.1} parent=1 // pred_fallthru
      _
    // Predicated region
    $region38: #{tpu_custom_call.1} parent=1 // pred_check
      _
    $region39: #{tpu_custom_call.1} parent=1 // pred_check_branch
      %102 = sbr.rel (0) target = $region41
    $region40: #{tpu_custom_call.1} parent=1 // pred_region
      %103 = dma.done [#allocation6], 80
    $region41: #{tpu_custom_call.1} parent=1 // pred_fallthru
      _
    // Predicated region
    $region42: #{tpu_custom_call.1} parent=1 // pred_check
      _
    $region43: #{tpu_custom_call.1} parent=1 // pred_check_branch
      %105 = sbr.rel (0) target = $region45
    $region44: #{tpu_custom_call.1} parent=1 // pred_region
      %106 = dma.done [#allocation9], 30720
    $region45: #{tpu_custom_call.1} parent=1 // pred_fallthru
      _
    // Predicated region
    $region46: #{tpu_custom_call.1} parent=1 // pred_check
      _
    $region47: #{tpu_custom_call.1} parent=1 // pred_check_branch
      %108 = sbr.rel (0) target = $region49
    $region48: #{tpu_custom_call.1} parent=1 // pred_region
      %109 = dma.done [#allocation9], 48
    $region49: #{tpu_custom_call.1} parent=1 // pred_fallthru
      _
    // Predicated region
    $region50: #{tpu_custom_call.1} parent=1 // pred_check
      _
    $region51: #{tpu_custom_call.1} parent=1 // pred_check_branch
      %111 = sbr.rel (0) target = $region53
    $region52: #{tpu_custom_call.1} parent=1 // pred_region
      %112 = dma.done [#allocation12], 5120
    $region53: #{tpu_custom_call.1} parent=1 // pred_fallthru
      _
    // Predicated region
    $region54: #{tpu_custom_call.1} parent=1 // pred_check
      _
    $region55: #{tpu_custom_call.1} parent=1 // pred_check_branch
      %114 = sbr.rel (0) target = $region57
    $region56: #{tpu_custom_call.1} parent=1 // pred_region
      %115 = dma.done [#allocation12], 16
    $region57: #{tpu_custom_call.1} parent=1 // pred_fallthru
      _
    %v116 = vld [vmem:[#allocation2] sm:$0xff]
    %v117 = vld [vmem:[#allocation2 + $0x8] sm:$0xff]
    %v118 = vld [vmem:[#allocation2 + $0x10] sm:$0xff]
    %v119 = vld [vmem:[#allocation2 + $0x18] sm:$0xff]
    %v120 = vld [vmem:[#allocation2 + $0x20] sm:$0xff]
    %v121 = vld [vmem:[#allocation2 + $0x28] sm:$0xff]
    %v122 = vld [vmem:[#allocation2 + $0x30] sm:$0xff]
    %v123 = vld [vmem:[#allocation2 + $0x38] sm:$0xff]
    %v124 = vld [vmem:[#allocation5] sm:$0xff]
    %v125 = vld [vmem:[#allocation5 + $0x8] sm:$0xff]
    %v126 = vld [vmem:[#allocation5 + $0x10] sm:$0xff]
    %v127 = vld [vmem:[#allocation5 + $0x18] sm:$0xff]
    %v128 = vld [vmem:[#allocation5 + $0x20] sm:$0xff]
    %v129 = vld [vmem:[#allocation5 + $0x28] sm:$0xff]
    %v130 = vld [vmem:[#allocation5 + $0x30] sm:$0xff]
    %v131 = vld [vmem:[#allocation5 + $0x38] sm:$0xff]
    %v132 = vld [vmem:[#allocation5 + $0x40] sm:$0xff]
    %v133 = vld [vmem:[#allocation5 + $0x48] sm:$0xff]
    %v134 = vld [vmem:[#allocation5 + $0x50] sm:$0xff]
    %v135 = vld [vmem:[#allocation5 + $0x58] sm:$0xff]
    %v136 = vld [vmem:[#allocation5 + $0x60] sm:$0xff]
    %v137 = vld [vmem:[#allocation5 + $0x68] sm:$0xff]
    %v138 = vld [vmem:[#allocation5 + $0x70] sm:$0xff]
    %v139 = vld [vmem:[#allocation5 + $0x78] sm:$0xff]
    %v140 = vld [vmem:[#allocation5 + $0x80] sm:$0xff]
    %v141 = vld [vmem:[#allocation5 + $0x88] sm:$0xff]
    %v142 = vld [vmem:[#allocation5 + $0x90] sm:$0xff]
    %v143 = vld [vmem:[#allocation5 + $0x98] sm:$0xff]
    %v144 = vld [vmem:[#allocation5 + $0xa0] sm:$0xff]
    %v145 = vld [vmem:[#allocation5 + $0xa8] sm:$0xff]
    %v146 = vld [vmem:[#allocation5 + $0xb0] sm:$0xff]
    %v147 = vld [vmem:[#allocation5 + $0xb8] sm:$0xff]
    %v148 = vld [vmem:[#allocation5 + $0xc0] sm:$0xff]
    %v149 = vld [vmem:[#allocation5 + $0xc8] sm:$0xff]
    %v150 = vld [vmem:[#allocation5 + $0xd0] sm:$0xff]
    %v151 = vld [vmem:[#allocation5 + $0xd8] sm:$0xff]
    %v152 = vld [vmem:[#allocation5 + $0xe0] sm:$0xff]
    %v153 = vld [vmem:[#allocation5 + $0xe8] sm:$0xff]
    %v154 = vld [vmem:[#allocation5 + $0xf0] sm:$0xff]
    %v155 = vld [vmem:[#allocation5 + $0xf8] sm:$0xff]
    %v156 = vld [vmem:[#allocation5 + $0x100] sm:$0xff]
    %v157 = vld [vmem:[#allocation5 + $0x108] sm:$0xff]
    %v158 = vld [vmem:[#allocation5 + $0x110] sm:$0xff]
    %v159 = vld [vmem:[#allocation5 + $0x118] sm:$0xff]
    %v160 = vld [vmem:[#allocation5 + $0x120] sm:$0xff]
    %v161 = vld [vmem:[#allocation5 + $0x128] sm:$0xff]
    %v162 = vld [vmem:[#allocation5 + $0x130] sm:$0xff]
    %v163 = vld [vmem:[#allocation5 + $0x138] sm:$0xff]
    %v164 = vld [vmem:[#allocation5 + $0x140] sm:$0xff]
    %v165 = vld [vmem:[#allocation5 + $0x148] sm:$0xff]
    %v166 = vld [vmem:[#allocation5 + $0x150] sm:$0xff]
    %v167 = vld [vmem:[#allocation5 + $0x158] sm:$0xff]
    %v168 = vld [vmem:[#allocation5 + $0x160] sm:$0xff]
    %v169 = vld [vmem:[#allocation5 + $0x168] sm:$0xff]
    %v170 = vld [vmem:[#allocation5 + $0x170] sm:$0xff]
    %v171 = vld [vmem:[#allocation5 + $0x178] sm:$0xff]
    %v172 = vld [vmem:[#allocation5 + $0x180] sm:$0xff]
    %v173 = vld [vmem:[#allocation5 + $0x188] sm:$0xff]
    %v174 = vld [vmem:[#allocation5 + $0x190] sm:$0xff]
    %v175 = vld [vmem:[#allocation5 + $0x198] sm:$0xff]
    %v176 = vld [vmem:[#allocation5 + $0x1a0] sm:$0xff]
    %v177 = vld [vmem:[#allocation5 + $0x1a8] sm:$0xff]
    %v178 = vld [vmem:[#allocation5 + $0x1b0] sm:$0xff]
    %v179 = vld [vmem:[#allocation5 + $0x1b8] sm:$0xff]
    %v180 = vld [vmem:[#allocation5 + $0x1c0] sm:$0xff]
    %v181 = vld [vmem:[#allocation5 + $0x1c8] sm:$0xff]
    %v182 = vld [vmem:[#allocation5 + $0x1d0] sm:$0xff]
    %v183 = vld [vmem:[#allocation5 + $0x1d8] sm:$0xff]
    %vm184 = vcmask 261120
    %v186 = vsel %vm184, %v116, 0
    %v189 = vsel %vm184, %v117, 0
    %v192 = vsel %vm184, %v118, 0
    %v195 = vsel %vm184, %v119, 0
    %v198 = vsel %vm184, %v120, 0
    %v201 = vsel %vm184, %v121, 0
    %v204 = vsel %vm184, %v122, 0
    %v207 = vsel %vm184, %v123, 0
    %209 = vmatprep.subr.mxu0 %v125
    %210 = vmatpush1.msra.mxu0 %v124
    %211 = vmatprep.subr.mxu0 %v140
    %212 = vmatpush1.msra.mxu0 %v139
    %213 = vmatprep.subr.mxu0 %v155
    %214 = vmatpush1.msra.mxu0 %v154
    %215 = vmatprep.subr.mxu0 %v170
    %216 = vmatpush1.msra.mxu0 %v169
    %217 = vmatprep.subr.mxu0 0.0
    %218 = vmatpush1.msra.mxu0 0.0
    %219 = vmatprep.subr.mxu0 0.0
    %220 = vmatpush1.msra.mxu0 0.0
    %221 = vmatprep.subr.mxu0 0.0
    %222 = vmatpush1.msra.mxu0 0.0
    %223 = vmatprep.subr.mxu0 0.0
    %224 = vmatpush1.msra.mxu0 0.0
    %225 = vmatprep.subr.mxu0 0.0
    %226 = vmatpush1.msra.mxu0 0.0
    %227 = vmatprep.subr.mxu0 0.0
    %228 = vmatpush1.msra.mxu0 0.0
    %229 = vmatprep.subr.mxu0 0.0
    %230 = vmatpush1.msra.mxu0 0.0
    %231 = vmatprep.subr.mxu0 0.0
    %232 = vmatpush1.msra.mxu0 0.0
    %233 = vmatprep.subr.mxu0 0.0
    %234 = vmatpush1.msra.mxu0 0.0
    %235 = vmatprep.subr.mxu0 0.0
    %236 = vmatpush1.msra.mxu0 0.0
    %237 = vmatprep.subr.mxu0 0.0
    %238 = vmatpush1.msra.mxu0 0.0
    %239 = vmatprep.subr.mxu0 0.0
    %240 = vmatpush1.msra.mxu0 0.0
    %241 = vmatprep.subr.mxu0 0.0
    %242 = vmatpush1.msra.mxu0 0.0
    %243 = vmatprep.subr.mxu0 0.0
    %244 = vmatpush1.msra.mxu0 0.0
    %245 = vmatprep.subr.mxu0 0.0
    %246 = vmatpush1.msra.mxu0 0.0
    %247 = vmatprep.subr.mxu0 0.0
    %248 = vmatpush1.msra.mxu0 0.0
    %249 = vmatprep.subr.mxu0 0.0
    %250 = vmatpush1.msra.mxu0 0.0
    %251 = vmatprep.subr.mxu0 0.0
    %252 = vmatpush1.msra.mxu0 0.0
    %253 = vmatprep.subr.mxu0 0.0
    %254 = vmatpush1.msra.mxu0 0.0
    %255 = vmatprep.subr.mxu0 0.0
    %256 = vmatpush1.msra.mxu0 0.0
    %257 = vmatprep.subr.mxu0 0.0
    %258 = vmatpush1.msra.mxu0 0.0
    %259 = vmatprep.subr.mxu0 0.0
    %260 = vmatpush1.msra.mxu0 0.0
    %261 = vmatprep.subr.mxu0 0.0
    %262 = vmatpush1.msra.mxu0 0.0
    %263 = vmatprep.subr.mxu0 0.0
    %264 = vmatpush1.msra.mxu0 0.0
    %265 = vmatprep.subr.mxu0 0.0
    %266 = vmatpush1.msra.mxu0 0.0
    %267 = vmatprep.subr.mxu0 0.0
    %268 = vmatpush1.msra.mxu0 0.0
    %269 = vmatprep.subr.mxu0 0.0
    %270 = vmatpush1.msra.mxu0 0.0
    %271 = vmatprep.subr.mxu0 0.0
    %272 = vmatpush1.msra.mxu0 0.0
    %273 = vmatprep.mubr.f32.mxu0 0.0
    %274 = vmatmul.mubr.f32.gmra.mrb[0].mxu0 %v186
    %v275 = vpop.f32.mrb[0].mxu0
    %v276 = vadd.f32 0.0, %v275
    %v277 = vpop.f32.mrb[0].mxu0
    %v278 = vadd.f32 0.0, %v277
    %279 = vmatprep.mubr.f32.mxu0 0.0
    %280 = vmatmul.mubr.f32.gmra.mrb[0].mxu0 %v189
    %v281 = vpop.f32.mrb[0].mxu0
    %v282 = vadd.f32 0.0, %v281
    %v283 = vpop.f32.mrb[0].mxu0
    %v284 = vadd.f32 0.0, %v283
    %285 = vmatprep.mubr.f32.mxu0 0.0
    %286 = vmatmul.mubr.f32.gmra.mrb[0].mxu0 %v192
    %v287 = vpop.f32.mrb[0].mxu0
    %v288 = vadd.f32 0.0, %v287
    %v289 = vpop.f32.mrb[0].mxu0
    %v290 = vadd.f32 0.0, %v289
    %291 = vmatprep.mubr.f32.mxu0 0.0
    %292 = vmatmul.mubr.f32.gmra.mrb[0].mxu0 %v195
    %v293 = vpop.f32.mrb[0].mxu0
    %v294 = vadd.f32 0.0, %v293
    %v295 = vpop.f32.mrb[0].mxu0
    %v296 = vadd.f32 0.0, %v295
    %297 = vmatprep.mubr.f32.mxu0 0.0
    %298 = vmatmul.mubr.f32.gmra.mrb[0].mxu0 %v198
    %v299 = vpop.f32.mrb[0].mxu0
    %v300 = vadd.f32 0.0, %v299
    %v301 = vpop.f32.mrb[0].mxu0
    %v302 = vadd.f32 0.0, %v301
    %303 = vmatprep.mubr.f32.mxu0 0.0
    %304 = vmatmul.mubr.f32.gmra.mrb[0].mxu0 %v201
    %v305 = vpop.f32.mrb[0].mxu0
    %v306 = vadd.f32 0.0, %v305
    %v307 = vpop.f32.mrb[0].mxu0
    %v308 = vadd.f32 0.0, %v307
    %309 = vmatprep.mubr.f32.mxu0 0.0
    %310 = vmatmul.mubr.f32.gmra.mrb[0].mxu0 %v204
    %v311 = vpop.f32.mrb[0].mxu0
    %v312 = vadd.f32 0.0, %v311
    %v313 = vpop.f32.mrb[0].mxu0
    %v314 = vadd.f32 0.0, %v313
    %315 = vmatprep.mubr.f32.mxu0 0.0
    %316 = vmatmul.mubr.f32.gmra.mrb[0].mxu0 %v207
    %v317 = vpop.f32.mrb[0].mxu0
    %v318 = vadd.f32 0.0, %v317
    %v319 = vpop.f32.mrb[0].mxu0
    %320 = vdwg.mxu0
    %321 = vmatprep.subr.mxu0 %v127
    %322 = vmatpush1.msra.mxu0 %v126
    %323 = vmatprep.subr.mxu0 %v142
    %324 = vmatpush1.msra.mxu0 %v141
    %325 = vmatprep.subr.mxu0 %v157
    %326 = vmatpush1.msra.mxu0 %v156
    %327 = vmatprep.subr.mxu0 %v172
    %328 = vmatpush1.msra.mxu0 %v171
    %329 = vmatprep.subr.mxu0 0.0
    %330 = vmatpush1.msra.mxu0 0.0
    %331 = vmatprep.subr.mxu0 0.0
    %332 = vmatpush1.msra.mxu0 0.0
    %333 = vmatprep.subr.mxu0 0.0
    %334 = vmatpush1.msra.mxu0 0.0
    %335 = vmatprep.subr.mxu0 0.0
    %336 = vmatpush1.msra.mxu0 0.0
    %337 = vmatprep.subr.mxu0 0.0
    %338 = vmatpush1.msra.mxu0 0.0
    %339 = vmatprep.subr.mxu0 0.0
    %340 = vmatpush1.msra.mxu0 0.0
    %341 = vmatprep.subr.mxu0 0.0
    %342 = vmatpush1.msra.mxu0 0.0
    %343 = vmatprep.subr.mxu0 0.0
    %344 = vmatpush1.msra.mxu0 0.0
    %345 = vmatprep.subr.mxu0 0.0
    %346 = vmatpush1.msra.mxu0 0.0
    %347 = vmatprep.subr.mxu0 0.0
    %348 = vmatpush1.msra.mxu0 0.0
    %349 = vmatprep.subr.mxu0 0.0
    %350 = vmatpush1.msra.mxu0 0.0
    %351 = vmatprep.subr.mxu0 0.0
    %352 = vmatpush1.msra.mxu0 0.0
    %353 = vmatprep.subr.mxu0 0.0
    %354 = vmatpush1.msra.mxu0 0.0
    %355 = vmatprep.subr.mxu0 0.0
    %356 = vmatpush1.msra.mxu0 0.0
    %357 = vmatprep.subr.mxu0 0.0
    %358 = vmatpush1.msra.mxu0 0.0
    %359 = vmatprep.subr.mxu0 0.0
    %360 = vmatpush1.msra.mxu0 0.0
    %361 = vmatprep.subr.mxu0 0.0
    %362 = vmatpush1.msra.mxu0 0.0
    %363 = vmatprep.subr.mxu0 0.0
    %364 = vmatpush1.msra.mxu0 0.0
    %365 = vmatprep.subr.mxu0 0.0
    %366 = vmatpush1.msra.mxu0 0.0
    %367 = vmatprep.subr.mxu0 0.0
    %368 = vmatpush1.msra.mxu0 0.0
    %369 = vmatprep.subr.mxu0 0.0
    %370 = vmatpush1.msra.mxu0 0.0
    %371 = vmatprep.subr.mxu0 0.0
    %372 = vmatpush1.msra.mxu0 0.0
    %373 = vmatprep.subr.mxu0 0.0
    %374 = vmatpush1.msra.mxu0 0.0
    %375 = vmatprep.subr.mxu0 0.0
    %376 = vmatpush1.msra.mxu0 0.0
    %377 = vmatprep.subr.mxu0 0.0
    %378 = vmatpush1.msra.mxu0 0.0
    %379 = vmatprep.subr.mxu0 0.0
    %380 = vmatpush1.msra.mxu0 0.0
    %381 = vmatprep.subr.mxu0 0.0
    %382 = vmatpush1.msra.mxu0 0.0
    %383 = vmatprep.subr.mxu0 0.0
    %384 = vmatpush1.msra.mxu0 0.0
    %385 = vmatprep.mubr.f32.mxu0 0.0
    %386 = vmatmul.mubr.f32.gmra.mrb[0].mxu0 %v186
    %v387 = vpop.f32.mrb[0].mxu0
    %v388 = vpop.f32.mrb[0].mxu0
    %v389 = vadd.f32 0.0, %v388
    %390 = vmatprep.mubr.f32.mxu0 0.0
    %391 = vmatmul.mubr.f32.gmra.mrb[0].mxu0 %v189
    %v392 = vpop.f32.mrb[0].mxu0
    %v393 = vadd.f32 0.0, %v392
    %v394 = vpop.f32.mrb[0].mxu0
    %v395 = vadd.f32 0.0, %v394
    %396 = vmatprep.mubr.f32.mxu0 0.0
    %397 = vmatmul.mubr.f32.gmra.mrb[0].mxu0 %v192
    %v398 = vpop.f32.mrb[0].mxu0
    %v399 = vadd.f32 0.0, %v398
    %v400 = vpop.f32.mrb[0].mxu0
    %v401 = vadd.f32 0.0, %v400
    %402 = vmatprep.mubr.f32.mxu0 0.0
    %403 = vmatmul.mubr.f32.gmra.mrb[0].mxu0 %v195
    %v404 = vpop.f32.mrb[0].mxu0
    %v405 = vadd.f32 0.0, %v404
    %v406 = vpop.f32.mrb[0].mxu0
    %v407 = vadd.f32 0.0, %v406
    %408 = vmatprep.mubr.f32.mxu0 0.0
    %409 = vmatmul.mubr.f32.gmra.mrb[0].mxu0 %v198
    %v410 = vpop.f32.mrb[0].mxu0
    %v411 = vadd.f32 0.0, %v410
    %v412 = vpop.f32.mrb[0].mxu0
    %v413 = vadd.f32 0.0, %v412
    %414 = vmatprep.mubr.f32.mxu0 0.0
    %415 = vmatmul.mubr.f32.gmra.mrb[0].mxu0 %v201
    %v416 = vpop.f32.mrb[0].mxu0
    %v417 = vadd.f32 0.0, %v416
    %v418 = vpop.f32.mrb[0].mxu0
    %v419 = vadd.f32 0.0, %v418
    %420 = vmatprep.mubr.f32.mxu0 0.0
    %421 = vmatmul.mubr.f32.gmra.mrb[0].mxu0 %v204
    %v422 = vpop.f32.mrb[0].mxu0
    %v423 = vadd.f32 0.0, %v422
    %v424 = vpop.f32.mrb[0].mxu0
    %425 = vmatprep.mubr.f32.mxu0 0.0
    %426 = vmatmul.mubr.f32.gmra.mrb[0].mxu0 %v207
    %v427 = vpop.f32.mrb[0].mxu0
    %v428 = vadd.f32 0.0, %v427
    %v429 = vpop.f32.mrb[0].mxu0
    %430 = vdwg.mxu0
    %431 = vmatprep.subr.mxu0 %v129
    %432 = vmatpush1.msra.mxu0 %v128
    %433 = vmatprep.subr.mxu0 %v144
    %434 = vmatpush1.msra.mxu0 %v143
    %435 = vmatprep.subr.mxu0 %v159
    %436 = vmatpush1.msra.mxu0 %v158
    %437 = vmatprep.subr.mxu0 %v174
    %438 = vmatpush1.msra.mxu0 %v173
    %439 = vmatprep.subr.mxu0 0.0
    %440 = vmatpush1.msra.mxu0 0.0
    %441 = vmatprep.subr.mxu0 0.0
    %442 = vmatpush1.msra.mxu0 0.0
    %443 = vmatprep.subr.mxu0 0.0
    %444 = vmatpush1.msra.mxu0 0.0
    %445 = vmatprep.subr.mxu0 0.0
    %446 = vmatpush1.msra.mxu0 0.0
    %447 = vmatprep.subr.mxu0 0.0
    %448 = vmatpush1.msra.mxu0 0.0
    %449 = vmatprep.subr.mxu0 0.0
    %450 = vmatpush1.msra.mxu0 0.0
    %451 = vmatprep.subr.mxu0 0.0
    %452 = vmatpush1.msra.mxu0 0.0
    %453 = vmatprep.subr.mxu0 0.0
    %454 = vmatpush1.msra.mxu0 0.0
    %455 = vmatprep.subr.mxu0 0.0
    %456 = vmatpush1.msra.mxu0 0.0
    %457 = vmatprep.subr.mxu0 0.0
    %458 = vmatpush1.msra.mxu0 0.0
    %459 = vmatprep.subr.mxu0 0.0
    %460 = vmatpush1.msra.mxu0 0.0
    %461 = vmatprep.subr.mxu0 0.0
    %462 = vmatpush1.msra.mxu0 0.0
    %463 = vmatprep.subr.mxu0 0.0
    %464 = vmatpush1.msra.mxu0 0.0
    %465 = vmatprep.subr.mxu0 0.0
    %466 = vmatpush1.msra.mxu0 0.0
    %467 = vmatprep.subr.mxu0 0.0
    %468 = vmatpush1.msra.mxu0 0.0
    %469 = vmatprep.subr.mxu0 0.0
    %470 = vmatpush1.msra.mxu0 0.0
    %471 = vmatprep.subr.mxu0 0.0
    %472 = vmatpush1.msra.mxu0 0.0
    %473 = vmatprep.subr.mxu0 0.0
    %474 = vmatpush1.msra.mxu0 0.0
    %475 = vmatprep.subr.mxu0 0.0
    %476 = vmatpush1.msra.mxu0 0.0
    %477 = vmatprep.subr.mxu0 0.0
    %478 = vmatpush1.msra.mxu0 0.0
    %479 = vmatprep.subr.mxu0 0.0
    %480 = vmatpush1.msra.mxu0 0.0
    %481 = vmatprep.subr.mxu0 0.0
    %482 = vmatpush1.msra.mxu0 0.0
    %483 = vmatprep.subr.mxu0 0.0
    %484 = vmatpush1.msra.mxu0 0.0
    %485 = vmatprep.subr.mxu0 0.0
    %486 = vmatpush1.msra.mxu0 0.0
    %487 = vmatprep.subr.mxu0 0.0
    %488 = vmatpush1.msra.mxu0 0.0
    %489 = vmatprep.subr.mxu0 0.0
    %490 = vmatpush1.msra.mxu0 0.0
    %491 = vmatprep.subr.mxu0 0.0
    %492 = vmatpush1.msra.mxu0 0.0
    %493 = vmatprep.subr.mxu0 0.0
    %494 = vmatpush1.msra.mxu0 0.0
    %495 = vmatprep.mubr.f32.mxu0 0.0
    %496 = vmatmul.mubr.f32.gmra.mrb[0].mxu0 %v186
    %v497 = vpop.f32.mrb[0].mxu0
    %v498 = vpop.f32.mrb[0].mxu0
    %499 = vmatprep.mubr.f32.mxu0 0.0
    %500 = vmatmul.mubr.f32.gmra.mrb[0].mxu0 %v189
    %v501 = vpop.f32.mrb[0].mxu0
    %v502 = vadd.f32 0.0, %v501
    %v503 = vpop.f32.mrb[0].mxu0
    %504 = vmatprep.mubr.f32.mxu0 0.0
    %505 = vmatmul.mubr.f32.gmra.mrb[0].mxu0 %v192
    %v506 = vpop.f32.mrb[0].mxu0
    %v507 = vadd.f32 0.0, %v506
    %v508 = vpop.f32.mrb[0].mxu0
    %v509 = vadd.f32 0.0, %v508
    %510 = vmatprep.mubr.f32.mxu0 0.0
    %511 = vmatmul.mubr.f32.gmra.mrb[0].mxu0 %v195
    %v512 = vpop.f32.mrb[0].mxu0
    %v513 = vadd.f32 0.0, %v512
    %v514 = vpop.f32.mrb[0].mxu0
    %v515 = vadd.f32 0.0, %v514
    %516 = vmatprep.mubr.f32.mxu0 0.0
    %517 = vmatmul.mubr.f32.gmra.mrb[0].mxu0 %v198
    %v518 = vpop.f32.mrb[0].mxu0
    %v519 = vadd.f32 0.0, %v518
    %v520 = vpop.f32.mrb[0].mxu0
    %v521 = vadd.f32 0.0, %v520
    %522 = vmatprep.mubr.f32.mxu0 0.0
    %523 = vmatmul.mubr.f32.gmra.mrb[0].mxu0 %v201
    %v524 = vpop.f32.mrb[0].mxu0
    %v525 = vadd.f32 0.0, %v524
    %v526 = vpop.f32.mrb[0].mxu0
    %v527 = vadd.f32 0.0, %v526
    %528 = vmatprep.mubr.f32.mxu0 0.0
    %529 = vmatmul.mubr.f32.gmra.mrb[0].mxu0 %v204
    %v530 = vpop.f32.mrb[0].mxu0
    %v531 = vadd.f32 0.0, %v530
    %v532 = vpop.f32.mrb[0].mxu0
    %v533 = vadd.f32 0.0, %v532
    %534 = vmatprep.mubr.f32.mxu0 0.0
    %535 = vmatmul.mubr.f32.gmra.mrb[0].mxu0 %v207
    %v536 = vpop.f32.mrb[0].mxu0
    %v537 = vpop.f32.mrb[0].mxu0
    %v538 = vadd.f32 0.0, %v537
    %539 = vdwg.mxu0
    %540 = vmatprep.subr.mxu0 %v131
    %541 = vmatpush1.msra.mxu0 %v130
    %542 = vmatprep.subr.mxu0 %v146
    %543 = vmatpush1.msra.mxu0 %v145
    %544 = vmatprep.subr.mxu0 %v161
    %545 = vmatpush1.msra.mxu0 %v160
    %546 = vmatprep.subr.mxu0 %v176
    %547 = vmatpush1.msra.mxu0 %v175
    %548 = vmatprep.subr.mxu0 0.0
    %549 = vmatpush1.msra.mxu0 0.0
    %550 = vmatprep.subr.mxu0 0.0
    %551 = vmatpush1.msra.mxu0 0.0
    %552 = vmatprep.subr.mxu0 0.0
    %553 = vmatpush1.msra.mxu0 0.0
    %554 = vmatprep.subr.mxu0 0.0
    %555 = vmatpush1.msra.mxu0 0.0
    %556 = vmatprep.subr.mxu0 0.0
    %557 = vmatpush1.msra.mxu0 0.0
    %558 = vmatprep.subr.mxu0 0.0
    %559 = vmatpush1.msra.mxu0 0.0
    %560 = vmatprep.subr.mxu0 0.0
    %561 = vmatpush1.msra.mxu0 0.0
    %562 = vmatprep.subr.mxu0 0.0
    %563 = vmatpush1.msra.mxu0 0.0
    %564 = vmatprep.subr.mxu0 0.0
    %565 = vmatpush1.msra.mxu0 0.0
    %566 = vmatprep.subr.mxu0 0.0
    %567 = vmatpush1.msra.mxu0 0.0
    %568 = vmatprep.subr.mxu0 0.0
    %569 = vmatpush1.msra.mxu0 0.0
    %570 = vmatprep.subr.mxu0 0.0
    %571 = vmatpush1.msra.mxu0 0.0
    %572 = vmatprep.subr.mxu0 0.0
    %573 = vmatpush1.msra.mxu0 0.0
    %574 = vmatprep.subr.mxu0 0.0
    %575 = vmatpush1.msra.mxu0 0.0
    %576 = vmatprep.subr.mxu0 0.0
    %577 = vmatpush1.msra.mxu0 0.0
    %578 = vmatprep.subr.mxu0 0.0
    %579 = vmatpush1.msra.mxu0 0.0
    %580 = vmatprep.subr.mxu0 0.0
    %581 = vmatpush1.msra.mxu0 0.0
    %582 = vmatprep.subr.mxu0 0.0
    %583 = vmatpush1.msra.mxu0 0.0
    %584 = vmatprep.subr.mxu0 0.0
    %585 = vmatpush1.msra.mxu0 0.0
    %586 = vmatprep.subr.mxu0 0.0
    %587 = vmatpush1.msra.mxu0 0.0
    %588 = vmatprep.subr.mxu0 0.0
    %589 = vmatpush1.msra.mxu0 0.0
    %590 = vmatprep.subr.mxu0 0.0
    %591 = vmatpush1.msra.mxu0 0.0
    %592 = vmatprep.subr.mxu0 0.0
    %593 = vmatpush1.msra.mxu0 0.0
    %594 = vmatprep.subr.mxu0 0.0
    %595 = vmatpush1.msra.mxu0 0.0
    %596 = vmatprep.subr.mxu0 0.0
    %597 = vmatpush1.msra.mxu0 0.0
    %598 = vmatprep.subr.mxu0 0.0
    %599 = vmatpush1.msra.mxu0 0.0
    %600 = vmatprep.subr.mxu0 0.0
    %601 = vmatpush1.msra.mxu0 0.0
    %602 = vmatprep.subr.mxu0 0.0
    %603 = vmatpush1.msra.mxu0 0.0
    %604 = vmatprep.mubr.f32.mxu0 0.0
    %605 = vmatmul.mubr.f32.gmra.mrb[0].mxu0 %v186
    %v606 = vpop.f32.mrb[0].mxu0
    %v607 = vadd.f32 0.0, %v606
    %v608 = vpop.f32.mrb[0].mxu0
    %609 = vmatprep.mubr.f32.mxu0 0.0
    %610 = vmatmul.mubr.f32.gmra.mrb[0].mxu0 %v189
    %v611 = vpop.f32.mrb[0].mxu0
    %v612 = vadd.f32 0.0, %v611
    %v613 = vpop.f32.mrb[0].mxu0
    %v614 = vadd.f32 0.0, %v613
    %615 = vmatprep.mubr.f32.mxu0 0.0
    %616 = vmatmul.mubr.f32.gmra.mrb[0].mxu0 %v192
    %v617 = vpop.f32.mrb[0].mxu0
    %v618 = vadd.f32 0.0, %v617
    %v619 = vpop.f32.mrb[0].mxu0
    %v620 = vadd.f32 0.0, %v619
    %621 = vmatprep.mubr.f32.mxu0 0.0
    %622 = vmatmul.mubr.f32.gmra.mrb[0].mxu0 %v195
    %v623 = vpop.f32.mrb[0].mxu0
    %v624 = vadd.f32 0.0, %v623
    %v625 = vpop.f32.mrb[0].mxu0
    %v626 = vadd.f32 0.0, %v625
    %627 = vmatprep.mubr.f32.mxu0 0.0
    %628 = vmatmul.mubr.f32.gmra.mrb[0].mxu0 %v198
    %v629 = vpop.f32.mrb[0].mxu0
    %v630 = vadd.f32 0.0, %v629
    %v631 = vpop.f32.mrb[0].mxu0
    %v632 = vadd.f32 0.0, %v631
    %633 = vmatprep.mubr.f32.mxu0 0.0
    %634 = vmatmul.mubr.f32.gmra.mrb[0].mxu0 %v201
    %v635 = vpop.f32.mrb[0].mxu0
    %v636 = vpop.f32.mrb[0].mxu0
    %v637 = vadd.f32 0.0, %v636
    %638 = vmatprep.mubr.f32.mxu0 0.0
    %639 = vmatmul.mubr.f32.gmra.mrb[0].mxu0 %v204
    %v640 = vpop.f32.mrb[0].mxu0
    %v641 = vpop.f32.mrb[0].mxu0
    %642 = vmatprep.mubr.f32.mxu0 0.0
    %643 = vmatmul.mubr.f32.gmra.mrb[0].mxu0 %v207
    %v644 = vpop.f32.mrb[0].mxu0
    %v645 = vpop.f32.mrb[0].mxu0
    %646 = vdwg.mxu0
    %647 = vmatprep.subr.mxu0 %v133
    %648 = vmatpush1.msra.mxu0 %v132
    %649 = vmatprep.subr.mxu0 %v148
    %650 = vmatpush1.msra.mxu0 %v147
    %651 = vmatprep.subr.mxu0 %v163
    %652 = vmatpush1.msra.mxu0 %v162
    %653 = vmatprep.subr.mxu0 %v178
    %654 = vmatpush1.msra.mxu0 %v177
    %655 = vmatprep.subr.mxu0 0.0
    %656 = vmatpush1.msra.mxu0 0.0
    %657 = vmatprep.subr.mxu0 0.0
    %658 = vmatpush1.msra.mxu0 0.0
    %659 = vmatprep.subr.mxu0 0.0
    %660 = vmatpush1.msra.mxu0 0.0
    %661 = vmatprep.subr.mxu0 0.0
    %662 = vmatpush1.msra.mxu0 0.0
    %663 = vmatprep.subr.mxu0 0.0
    %664 = vmatpush1.msra.mxu0 0.0
    %665 = vmatprep.subr.mxu0 0.0
    %666 = vmatpush1.msra.mxu0 0.0
    %667 = vmatprep.subr.mxu0 0.0
    %668 = vmatpush1.msra.mxu0 0.0
    %669 = vmatprep.subr.mxu0 0.0
    %670 = vmatpush1.msra.mxu0 0.0
    %671 = vmatprep.subr.mxu0 0.0
    %672 = vmatpush1.msra.mxu0 0.0
    %673 = vmatprep.subr.mxu0 0.0
    %674 = vmatpush1.msra.mxu0 0.0
    %675 = vmatprep.subr.mxu0 0.0
    %676 = vmatpush1.msra.mxu0 0.0
    %677 = vmatprep.subr.mxu0 0.0
    %678 = vmatpush1.msra.mxu0 0.0
    %679 = vmatprep.subr.mxu0 0.0
    %680 = vmatpush1.msra.mxu0 0.0
    %681 = vmatprep.subr.mxu0 0.0
    %682 = vmatpush1.msra.mxu0 0.0
    %683 = vmatprep.subr.mxu0 0.0
    %684 = vmatpush1.msra.mxu0 0.0
    %685 = vmatprep.subr.mxu0 0.0
    %686 = vmatpush1.msra.mxu0 0.0
    %687 = vmatprep.subr.mxu0 0.0
    %688 = vmatpush1.msra.mxu0 0.0
    %689 = vmatprep.subr.mxu0 0.0
    %690 = vmatpush1.msra.mxu0 0.0
    %691 = vmatprep.subr.mxu0 0.0
    %692 = vmatpush1.msra.mxu0 0.0
    %693 = vmatprep.subr.mxu0 0.0
    %694 = vmatpush1.msra.mxu0 0.0
    %695 = vmatprep.subr.mxu0 0.0
    %696 = vmatpush1.msra.mxu0 0.0
    %697 = vmatprep.subr.mxu0 0.0
    %698 = vmatpush1.msra.mxu0 0.0
    %699 = vmatprep.subr.mxu0 0.0
    %700 = vmatpush1.msra.mxu0 0.0
    %701 = vmatprep.subr.mxu0 0.0
    %702 = vmatpush1.msra.mxu0 0.0
    %703 = vmatprep.subr.mxu0 0.0
    %704 = vmatpush1.msra.mxu0 0.0
    %705 = vmatprep.subr.mxu0 0.0
    %706 = vmatpush1.msra.mxu0 0.0
    %707 = vmatprep.subr.mxu0 0.0
    %708 = vmatpush1.msra.mxu0 0.0
    %709 = vmatprep.subr.mxu0 0.0
    %710 = vmatpush1.msra.mxu0 0.0
    %711 = vmatprep.mubr.f32.mxu0 0.0
    %712 = vmatmul.mubr.f32.gmra.mrb[0].mxu0 %v186
    %v713 = vpop.f32.mrb[0].mxu0
    %v714 = vpop.f32.mrb[0].mxu0
    %715 = vmatprep.mubr.f32.mxu0 0.0
    %716 = vmatmul.mubr.f32.gmra.mrb[0].mxu0 %v189
    %v717 = vpop.f32.mrb[0].mxu0
    %v718 = vpop.f32.mrb[0].mxu0
    %719 = vmatprep.mubr.f32.mxu0 0.0
    %720 = vmatmul.mubr.f32.gmra.mrb[0].mxu0 %v192
    %v721 = vpop.f32.mrb[0].mxu0
    %v722 = vadd.f32 0.0, %v721
    %v723 = vpop.f32.mrb[0].mxu0
    %724 = vmatprep.mubr.f32.mxu0 0.0
    %725 = vmatmul.mubr.f32.gmra.mrb[0].mxu0 %v195
    %v726 = vpop.f32.mrb[0].mxu0
    %v727 = vadd.f32 0.0, %v726
    %v728 = vpop.f32.mrb[0].mxu0
    %v729 = vadd.f32 0.0, %v728
    %730 = vmatprep.mubr.f32.mxu0 0.0
    %731 = vmatmul.mubr.f32.gmra.mrb[0].mxu0 %v198
    %v732 = vpop.f32.mrb[0].mxu0
    %v733 = vadd.f32 0.0, %v732
    %v734 = vpop.f32.mrb[0].mxu0
    %v735 = vadd.f32 0.0, %v734
    %736 = vmatprep.mubr.f32.mxu0 0.0
    %737 = vmatmul.mubr.f32.gmra.mrb[0].mxu0 %v201
    %v738 = vpop.f32.mrb[0].mxu0
    %v739 = vadd.f32 0.0, %v738
    %v740 = vpop.f32.mrb[0].mxu0
    %v741 = vadd.f32 0.0, %v740
    %742 = vmatprep.mubr.f32.mxu0 0.0
    %743 = vmatmul.mubr.f32.gmra.mrb[0].mxu0 %v204
    %v744 = vpop.f32.mrb[0].mxu0
    %v745 = vadd.f32 0.0, %v744
    %v746 = vpop.f32.mrb[0].mxu0
    %v747 = vadd.f32 0.0, %v746
    %748 = vmatprep.mubr.f32.mxu0 0.0
    %749 = vmatmul.mubr.f32.gmra.mrb[0].mxu0 %v207
    %v750 = vpop.f32.mrb[0].mxu0
    %v751 = vpop.f32.mrb[0].mxu0
    %v752 = vadd.f32 0.0, %v751
    %753 = vdwg.mxu0
    %754 = vmatprep.subr.mxu0 %v135
    %755 = vmatpush1.msra.mxu0 %v134
    %756 = vmatprep.subr.mxu0 %v150
    %757 = vmatpush1.msra.mxu0 %v149
    %758 = vmatprep.subr.mxu0 %v165
    %759 = vmatpush1.msra.mxu0 %v164
    %760 = vmatprep.subr.mxu0 %v180
    %761 = vmatpush1.msra.mxu0 %v179
    %762 = vmatprep.subr.mxu0 0.0
    %763 = vmatpush1.msra.mxu0 0.0
    %764 = vmatprep.subr.mxu0 0.0
    %765 = vmatpush1.msra.mxu0 0.0
    %766 = vmatprep.subr.mxu0 0.0
    %767 = vmatpush1.msra.mxu0 0.0
    %768 = vmatprep.subr.mxu0 0.0
    %769 = vmatpush1.msra.mxu0 0.0
    %770 = vmatprep.subr.mxu0 0.0
    %771 = vmatpush1.msra.mxu0 0.0
    %772 = vmatprep.subr.mxu0 0.0
    %773 = vmatpush1.msra.mxu0 0.0
    %774 = vmatprep.subr.mxu0 0.0
    %775 = vmatpush1.msra.mxu0 0.0
    %776 = vmatprep.subr.mxu0 0.0
    %777 = vmatpush1.msra.mxu0 0.0
    %778 = vmatprep.subr.mxu0 0.0
    %779 = vmatpush1.msra.mxu0 0.0
    %780 = vmatprep.subr.mxu0 0.0
    %781 = vmatpush1.msra.mxu0 0.0
    %782 = vmatprep.subr.mxu0 0.0
    %783 = vmatpush1.msra.mxu0 0.0
    %784 = vmatprep.subr.mxu0 0.0
    %785 = vmatpush1.msra.mxu0 0.0
    %786 = vmatprep.subr.mxu0 0.0
    %787 = vmatpush1.msra.mxu0 0.0
    %788 = vmatprep.subr.mxu0 0.0
    %789 = vmatpush1.msra.mxu0 0.0
    %790 = vmatprep.subr.mxu0 0.0
    %791 = vmatpush1.msra.mxu0 0.0
    %792 = vmatprep.subr.mxu0 0.0
    %793 = vmatpush1.msra.mxu0 0.0
    %794 = vmatprep.subr.mxu0 0.0
    %795 = vmatpush1.msra.mxu0 0.0
    %796 = vmatprep.subr.mxu0 0.0
    %797 = vmatpush1.msra.mxu0 0.0
    %798 = vmatprep.subr.mxu0 0.0
    %799 = vmatpush1.msra.mxu0 0.0
    %800 = vmatprep.subr.mxu0 0.0
    %801 = vmatpush1.msra.mxu0 0.0
    %802 = vmatprep.subr.mxu0 0.0
    %803 = vmatpush1.msra.mxu0 0.0
    %804 = vmatprep.subr.mxu0 0.0
    %805 = vmatpush1.msra.mxu0 0.0
    %806 = vmatprep.subr.mxu0 0.0
    %807 = vmatpush1.msra.mxu0 0.0
    %808 = vmatprep.subr.mxu0 0.0
    %809 = vmatpush1.msra.mxu0 0.0
    %810 = vmatprep.subr.mxu0 0.0
    %811 = vmatpush1.msra.mxu0 0.0
    %812 = vmatprep.subr.mxu0 0.0
    %813 = vmatpush1.msra.mxu0 0.0
    %814 = vmatprep.subr.mxu0 0.0
    %815 = vmatpush1.msra.mxu0 0.0
    %816 = vmatprep.subr.mxu0 0.0
    %817 = vmatpush1.msra.mxu0 0.0
    %818 = vmatprep.mubr.f32.mxu0 0.0
    %819 = vmatmul.mubr.f32.gmra.mrb[0].mxu0 %v186
    %v820 = vpop.f32.mrb[0].mxu0
    %v821 = vadd.f32 0.0, %v820
    %v822 = vpop.f32.mrb[0].mxu0
    %823 = vmatprep.mubr.f32.mxu0 0.0
    %824 = vmatmul.mubr.f32.gmra.mrb[0].mxu0 %v189
    %v825 = vpop.f32.mrb[0].mxu0
    %v826 = vadd.f32 0.0, %v825
    %v827 = vpop.f32.mrb[0].mxu0
    %v828 = vadd.f32 0.0, %v827
    %829 = vmatprep.mubr.f32.mxu0 0.0
    %830 = vmatmul.mubr.f32.gmra.mrb[0].mxu0 %v192
    %v831 = vpop.f32.mrb[0].mxu0
    %v832 = vadd.f32 0.0, %v831
    %v833 = vpop.f32.mrb[0].mxu0
    %v834 = vadd.f32 0.0, %v833
    %835 = vmatprep.mubr.f32.mxu0 0.0
    %836 = vmatmul.mubr.f32.gmra.mrb[0].mxu0 %v195
    %v837 = vpop.f32.mrb[0].mxu0
    %v838 = vadd.f32 0.0, %v837
    %v839 = vpop.f32.mrb[0].mxu0
    %v840 = vadd.f32 0.0, %v839
    %841 = vmatprep.mubr.f32.mxu0 0.0
    %842 = vmatmul.mubr.f32.gmra.mrb[0].mxu0 %v198
    %v843 = vpop.f32.mrb[0].mxu0
    %v844 = vpop.f32.mrb[0].mxu0
    %v845 = vadd.f32 0.0, %v844
    %846 = vmatprep.mubr.f32.mxu0 0.0
    %847 = vmatmul.mubr.f32.gmra.mrb[0].mxu0 %v201
    %v848 = vpop.f32.mrb[0].mxu0
    %v849 = vpop.f32.mrb[0].mxu0
    %850 = vmatprep.mubr.f32.mxu0 0.0
    %851 = vmatmul.mubr.f32.gmra.mrb[0].mxu0 %v204
    %v852 = vpop.f32.mrb[0].mxu0
    %v853 = vpop.f32.mrb[0].mxu0
    %854 = vmatprep.mubr.f32.mxu0 0.0
    %855 = vmatmul.mubr.f32.gmra.mrb[0].mxu0 %v207
    %v856 = vpop.f32.mrb[0].mxu0
    %v857 = vpop.f32.mrb[0].mxu0
    %858 = vdwg.mxu0
    %859 = vmatprep.subr.mxu0 %v137
    %860 = vmatpush1.msra.mxu0 %v136
    %861 = vmatprep.subr.mxu0 %v152
    %862 = vmatpush1.msra.mxu0 %v151
    %863 = vmatprep.subr.mxu0 %v167
    %864 = vmatpush1.msra.mxu0 %v166
    %865 = vmatprep.subr.mxu0 %v182
    %866 = vmatpush1.msra.mxu0 %v181
    %867 = vmatprep.subr.mxu0 0.0
    %868 = vmatpush1.msra.mxu0 0.0
    %869 = vmatprep.subr.mxu0 0.0
    %870 = vmatpush1.msra.mxu0 0.0
    %871 = vmatprep.subr.mxu0 0.0
    %872 = vmatpush1.msra.mxu0 0.0
    %873 = vmatprep.subr.mxu0 0.0
    %874 = vmatpush1.msra.mxu0 0.0
    %875 = vmatprep.subr.mxu0 0.0
    %876 = vmatpush1.msra.mxu0 0.0
    %877 = vmatprep.subr.mxu0 0.0
    %878 = vmatpush1.msra.mxu0 0.0
    %879 = vmatprep.subr.mxu0 0.0
    %880 = vmatpush1.msra.mxu0 0.0
    %881 = vmatprep.subr.mxu0 0.0
    %882 = vmatpush1.msra.mxu0 0.0
    %883 = vmatprep.subr.mxu0 0.0
    %884 = vmatpush1.msra.mxu0 0.0
    %885 = vmatprep.subr.mxu0 0.0
    %886 = vmatpush1.msra.mxu0 0.0
    %887 = vmatprep.subr.mxu0 0.0
    %888 = vmatpush1.msra.mxu0 0.0
    %889 = vmatprep.subr.mxu0 0.0
    %890 = vmatpush1.msra.mxu0 0.0
    %891 = vmatprep.subr.mxu0 0.0
    %892 = vmatpush1.msra.mxu0 0.0
    %893 = vmatprep.subr.mxu0 0.0
    %894 = vmatpush1.msra.mxu0 0.0
    %895 = vmatprep.subr.mxu0 0.0
    %896 = vmatpush1.msra.mxu0 0.0
    %897 = vmatprep.subr.mxu0 0.0
    %898 = vmatpush1.msra.mxu0 0.0
    %899 = vmatprep.subr.mxu0 0.0
    %900 = vmatpush1.msra.mxu0 0.0
    %901 = vmatprep.subr.mxu0 0.0
    %902 = vmatpush1.msra.mxu0 0.0
    %903 = vmatprep.subr.mxu0 0.0
    %904 = vmatpush1.msra.mxu0 0.0
    %905 = vmatprep.subr.mxu0 0.0
    %906 = vmatpush1.msra.mxu0 0.0
    %907 = vmatprep.subr.mxu0 0.0
    %908 = vmatpush1.msra.mxu0 0.0
    %909 = vmatprep.subr.mxu0 0.0
    %910 = vmatpush1.msra.mxu0 0.0
    %911 = vmatprep.subr.mxu0 0.0
    %912 = vmatpush1.msra.mxu0 0.0
    %913 = vmatprep.subr.mxu0 0.0
    %914 = vmatpush1.msra.mxu0 0.0
    %915 = vmatprep.subr.mxu0 0.0
    %916 = vmatpush1.msra.mxu0 0.0
    %917 = vmatprep.subr.mxu0 0.0
    %918 = vmatpush1.msra.mxu0 0.0
    %919 = vmatprep.subr.mxu0 0.0
    %920 = vmatpush1.msra.mxu0 0.0
    %921 = vmatprep.subr.mxu0 0.0
    %922 = vmatpush1.msra.mxu0 0.0
    %923 = vmatprep.mubr.f32.mxu0 0.0
    %924 = vmatmul.mubr.f32.gmra.mrb[0].mxu0 %v186
    %v925 = vpop.f32.mrb[0].mxu0
    %v926 = vpop.f32.mrb[0].mxu0
    %927 = vmatprep.mubr.f32.mxu0 0.0
    %928 = vmatmul.mubr.f32.gmra.mrb[0].mxu0 %v189
    %v929 = vpop.f32.mrb[0].mxu0
    %v930 = vpop.f32.mrb[0].mxu0
    %931 = vmatprep.mubr.f32.mxu0 0.0
    %932 = vmatmul.mubr.f32.gmra.mrb[0].mxu0 %v192
    %v933 = vpop.f32.mrb[0].mxu0
    %v934 = vadd.f32 0.0, %v933
    %v935 = vpop.f32.mrb[0].mxu0
    %936 = vmatprep.mubr.f32.mxu0 0.0
    %937 = vmatmul.mubr.f32.gmra.mrb[0].mxu0 %v195
    %v938 = vpop.f32.mrb[0].mxu0
    %v939 = vadd.f32 0.0, %v938
    %v940 = vpop.f32.mrb[0].mxu0
    %v941 = vadd.f32 0.0, %v940
    %942 = vmatprep.mubr.f32.mxu0 0.0
    %943 = vmatmul.mubr.f32.gmra.mrb[0].mxu0 %v198
    %v944 = vpop.f32.mrb[0].mxu0
    %v945 = vadd.f32 0.0, %v944
    %v946 = vpop.f32.mrb[0].mxu0
    %v947 = vadd.f32 0.0, %v946
    %948 = vmatprep.mubr.f32.mxu0 0.0
    %949 = vmatmul.mubr.f32.gmra.mrb[0].mxu0 %v201
    %v950 = vpop.f32.mrb[0].mxu0
    %v951 = vadd.f32 0.0, %v950
    %v952 = vpop.f32.mrb[0].mxu0
    %v953 = vadd.f32 0.0, %v952
    %954 = vmatprep.mubr.f32.mxu0 0.0
    %955 = vmatmul.mubr.f32.gmra.mrb[0].mxu0 %v204
    %v956 = vpop.f32.mrb[0].mxu0
    %v957 = vpop.f32.mrb[0].mxu0
    %v958 = vadd.f32 0.0, %v957
    %959 = vmatprep.mubr.f32.mxu0 0.0
    %960 = vmatmul.mubr.f32.gmra.mrb[0].mxu0 %v207
    %v961 = vpop.f32.mrb[0].mxu0
    %v962 = vpop.f32.mrb[0].mxu0
    %963 = vdwg.mxu0
    %964 = vmatprep.subr.mxu0 0.0
    %965 = vmatpush1.msra.mxu0 %v138
    %966 = vmatprep.subr.mxu0 0.0
    %967 = vmatpush1.msra.mxu0 %v153
    %968 = vmatprep.subr.mxu0 0.0
    %969 = vmatpush1.msra.mxu0 %v168
    %970 = vmatprep.subr.mxu0 0.0
    %971 = vmatpush1.msra.mxu0 %v183
    %972 = vmatprep.subr.mxu0 0.0
    %973 = vmatpush1.msra.mxu0 0.0
    %974 = vmatprep.subr.mxu0 0.0
    %975 = vmatpush1.msra.mxu0 0.0
    %976 = vmatprep.subr.mxu0 0.0
    %977 = vmatpush1.msra.mxu0 0.0
    %978 = vmatprep.subr.mxu0 0.0
    %979 = vmatpush1.msra.mxu0 0.0
    %980 = vmatprep.subr.mxu0 0.0
    %981 = vmatpush1.msra.mxu0 0.0
    %982 = vmatprep.subr.mxu0 0.0
    %983 = vmatpush1.msra.mxu0 0.0
    %984 = vmatprep.subr.mxu0 0.0
    %985 = vmatpush1.msra.mxu0 0.0
    %986 = vmatprep.subr.mxu0 0.0
    %987 = vmatpush1.msra.mxu0 0.0
    %988 = vmatprep.subr.mxu0 0.0
    %989 = vmatpush1.msra.mxu0 0.0
    %990 = vmatprep.subr.mxu0 0.0
    %991 = vmatpush1.msra.mxu0 0.0
    %992 = vmatprep.subr.mxu0 0.0
    %993 = vmatpush1.msra.mxu0 0.0
    %994 = vmatprep.subr.mxu0 0.0
    %995 = vmatpush1.msra.mxu0 0.0
    %996 = vmatprep.subr.mxu0 0.0
    %997 = vmatpush1.msra.mxu0 0.0
    %998 = vmatprep.subr.mxu0 0.0
    %999 = vmatpush1.msra.mxu0 0.0
    %1000 = vmatprep.subr.mxu0 0.0
    %1001 = vmatpush1.msra.mxu0 0.0
    %1002 = vmatprep.subr.mxu0 0.0
    %1003 = vmatpush1.msra.mxu0 0.0
    %1004 = vmatprep.subr.mxu0 0.0
    %1005 = vmatpush1.msra.mxu0 0.0
    %1006 = vmatprep.subr.mxu0 0.0
    %1007 = vmatpush1.msra.mxu0 0.0
    %1008 = vmatprep.subr.mxu0 0.0
    %1009 = vmatpush1.msra.mxu0 0.0
    %1010 = vmatprep.subr.mxu0 0.0
    %1011 = vmatpush1.msra.mxu0 0.0
    %1012 = vmatprep.subr.mxu0 0.0
    %1013 = vmatpush1.msra.mxu0 0.0
    %1014 = vmatprep.subr.mxu0 0.0
    %1015 = vmatpush1.msra.mxu0 0.0
    %1016 = vmatprep.subr.mxu0 0.0
    %1017 = vmatpush1.msra.mxu0 0.0
    %1018 = vmatprep.subr.mxu0 0.0
    %1019 = vmatpush1.msra.mxu0 0.0
    %1020 = vmatprep.subr.mxu0 0.0
    %1021 = vmatpush1.msra.mxu0 0.0
    %1022 = vmatprep.subr.mxu0 0.0
    %1023 = vmatpush1.msra.mxu0 0.0
    %1024 = vmatprep.subr.mxu0 0.0
    %1025 = vmatpush1.msra.mxu0 0.0
    %1026 = vmatprep.subr.mxu0 0.0
    %1027 = vmatpush1.msra.mxu0 0.0
    %1028 = vmatprep.mubr.f32.mxu0 0.0
    %1029 = vmatmul.mubr.f32.gmra.mrb[0].mxu0 %v186
    %v1030 = vpop.f32.mrb[0].mxu0
    %v1031 = vpop.f32.mrb[0].mxu0
    %1032 = vmatprep.mubr.f32.mxu0 0.0
    %1033 = vmatmul.mubr.f32.gmra.mrb[0].mxu0 %v189
    %v1034 = vpop.f32.mrb[0].mxu0
    %v1035 = vpop.f32.mrb[0].mxu0
    %1036 = vmatprep.mubr.f32.mxu0 0.0
    %1037 = vmatmul.mubr.f32.gmra.mrb[0].mxu0 %v192
    %v1038 = vpop.f32.mrb[0].mxu0
    %v1039 = vpop.f32.mrb[0].mxu0
    %1040 = vmatprep.mubr.f32.mxu0 0.0
    %1041 = vmatmul.mubr.f32.gmra.mrb[0].mxu0 %v195
    %v1042 = vpop.f32.mrb[0].mxu0
    %v1043 = vpop.f32.mrb[0].mxu0
    %1044 = vmatprep.mubr.f32.mxu0 0.0
    %1045 = vmatmul.mubr.f32.gmra.mrb[0].mxu0 %v198
    %v1046 = vpop.f32.mrb[0].mxu0
    %v1047 = vadd.f32 0.0, %v1046
    %v1048 = vpop.f32.mrb[0].mxu0
    %1049 = vmatprep.mubr.f32.mxu0 0.0
    %1050 = vmatmul.mubr.f32.gmra.mrb[0].mxu0 %v201
    %v1051 = vpop.f32.mrb[0].mxu0
    %v1052 = vadd.f32 0.0, %v1051
    %v1053 = vpop.f32.mrb[0].mxu0
    %1054 = vmatprep.mubr.f32.mxu0 0.0
    %1055 = vmatmul.mubr.f32.gmra.mrb[0].mxu0 %v204
    %v1056 = vpop.f32.mrb[0].mxu0
    %v1057 = vadd.f32 0.0, %v1056
    %v1058 = vpop.f32.mrb[0].mxu0
    %1059 = vmatprep.mubr.f32.mxu0 0.0
    %1060 = vmatmul.mubr.f32.gmra.mrb[0].mxu0 %v207
    %v1061 = vpop.f32.mrb[0].mxu0
    %v1062 = vadd.f32 0.0, %v1061
    %v1063 = vpop.f32.mrb[0].mxu0
    %1064 = vdwg.mxu0
    %v1065 = vmax.f32 %v276, %v300
    %v1066 = vmax.f32 %v282, %v306
    %v1067 = vmax.f32 %v288, %v312
    %v1068 = vmax.f32 %v294, %v318
    %v1069 = vmax.f32 %v1065, %v1066
    %v1070 = vmax.f32 %v1067, %v1068
    %v1071 = vmax.f32 %v1069, %v1070
    %v1072 = vadd.f32 %v278, %v393
    %v1073 = vadd.f32 %v284, %v399
    %v1074 = vadd.f32 %v290, %v405
    %v1075 = vadd.f32 %v296, %v411
    %v1076 = vadd.f32 %v302, %v417
    %v1077 = vadd.f32 %v308, %v423
    %v1078 = vadd.f32 %v314, %v428
    %v1079 = vmax.f32 %v1072, %v1076
    %v1080 = vmax.f32 %v1073, %v1077
    %v1081 = vmax.f32 %v1074, %v1078
    %v1082 = vmax.f32 %v1079, %v1080
    %v1083 = vmax.f32 %v1081, %v1075
    %v1084 = vmax.f32 %v1082, %v1083
    %v1085 = vadd.f32 %v389, %v502
    %v1086 = vadd.f32 %v395, %v507
    %v1087 = vadd.f32 %v401, %v513
    %v1088 = vadd.f32 %v407, %v519
    %v1089 = vadd.f32 %v413, %v525
    %v1090 = vadd.f32 %v419, %v531
    %v1091 = vadd.f32 %v1085, %v509
    %v1092 = vadd.f32 %v1086, %v515
    %v1093 = vadd.f32 %v1087, %v521
    %v1094 = vadd.f32 %v1088, %v527
    %v1095 = vadd.f32 %v1089, %v533
    %v1096 = vadd.f32 %v1090, %v538
    %v1097 = vmax.f32 %v1091, %v1095
    %v1098 = vmax.f32 %v1092, %v1096
    %v1099 = vmax.f32 %v1097, %v1098
    %v1100 = vmax.f32 %v1093, %v1094
    %v1101 = vmax.f32 %v1099, %v1100
    %v1102 = vadd.f32 %v607, %v614
    %v1103 = vadd.f32 %v612, %v620
    %v1104 = vadd.f32 %v618, %v626
    %v1105 = vadd.f32 %v624, %v632
    %v1106 = vadd.f32 %v630, %v637
    %v1107 = vadd.f32 %v1102, %v722
    %v1108 = vadd.f32 %v1103, %v727
    %v1109 = vadd.f32 %v1104, %v733
    %v1110 = vadd.f32 %v1105, %v739
    %v1111 = vadd.f32 %v1106, %v745
    %v1112 = vadd.f32 %v1107, %v729
    %v1113 = vadd.f32 %v1108, %v735
    %v1114 = vadd.f32 %v1109, %v741
    %v1115 = vadd.f32 %v1110, %v747
    %v1116 = vadd.f32 %v1111, %v752
    %v1117 = vmax.f32 %v1112, %v1116
    %v1118 = vmax.f32 %v1117, %v1113
    %v1119 = vmax.f32 %v1114, %v1115
    %v1120 = vmax.f32 %v1118, %v1119
    %v1121 = vadd.f32 %v821, %v828
    %v1122 = vadd.f32 %v826, %v834
    %v1123 = vadd.f32 %v832, %v840
    %v1124 = vadd.f32 %v838, %v845
    %v1125 = vadd.f32 %v1121, %v934
    %v1126 = vadd.f32 %v1122, %v939
    %v1127 = vadd.f32 %v1123, %v945
    %v1128 = vadd.f32 %v1124, %v951
    %v1129 = vadd.f32 %v1125, %v941
    %v1130 = vadd.f32 %v1126, %v947
    %v1131 = vadd.f32 %v1127, %v953
    %v1132 = vadd.f32 %v1128, %v958
    %v1133 = vadd.f32 %v1129, %v1047
    %v1134 = vadd.f32 %v1130, %v1052
    %v1135 = vadd.f32 %v1131, %v1057
    %v1136 = vadd.f32 %v1132, %v1062
    %v1137 = vmax.f32 %v1133, %v1134
    %v1138 = vmax.f32 %v1135, %v1136
    %v1139 = vmax.f32 %v1137, %v1138
    %v1140 = vld [vmem:[#allocation7] sm:$0x1f]
    %v1142 = vlaneseq
    %v1143 = vshrl.u32 %v1142, 7
    %v1144 = vsub.s32 0, %v1143
    %v1145 = vrot.slane %v1140, %v1144
    %v1146 = vlaneseq
    %v1147 = vshrl.u32 %v1146, 7
    %v1148 = vsub.s32 1, %v1147
    %v1149 = vrot.slane %v1140, %v1148
    %v1150 = vlaneseq
    %v1151 = vshrl.u32 %v1150, 7
    %v1152 = vsub.s32 2, %v1151
    %v1153 = vrot.slane %v1140, %v1152
    %v1154 = vlaneseq
    %v1155 = vshrl.u32 %v1154, 7
    %v1156 = vsub.s32 3, %v1155
    %v1157 = vrot.slane %v1140, %v1156
    %v1158 = vlaneseq
    %v1159 = vshrl.u32 %v1158, 7
    %v1160 = vsub.s32 4, %v1159
    %v1161 = vrot.slane %v1140, %v1160
    %v1167 = vadd.f32 %v1071, %v1145
    %v1168 = vadd.f32 %v1084, %v1149
    %v1169 = vadd.f32 %v1101, %v1153
    %v1170 = vadd.f32 %v1120, %v1157
    %v1171 = vadd.f32 %v1139, %v1161
    %v1172 = vmax.f32 %v1167, 0.0
    %v1173 = vmax.f32 %v1168, 0.0
    %v1174 = vmax.f32 %v1169, 0.0
    %v1175 = vmax.f32 %v1170, 0.0
    %v1176 = vmax.f32 %v1171, 0.0
    %v1177 = vld [vmem:[#allocation8] sm:$0xff]
    %v1178 = vld [vmem:[#allocation8 + $0x8] sm:$0xff]
    %v1179 = vld [vmem:[#allocation8 + $0x10] sm:$0xff]
    %v1180 = vld [vmem:[#allocation8 + $0x18] sm:$0xff]
    %v1181 = vld [vmem:[#allocation8 + $0x20] sm:$0xff]
    %v1182 = vld [vmem:[#allocation8 + $0x28] sm:$0xff]
    %v1183 = vld [vmem:[#allocation8 + $0x30] sm:$0xff]
    %v1184 = vld [vmem:[#allocation8 + $0x38] sm:$0xff]
    %v1185 = vld [vmem:[#allocation8 + $0x40] sm:$0xff]
    %v1186 = vld [vmem:[#allocation8 + $0x48] sm:$0xff]
    %v1187 = vld [vmem:[#allocation8 + $0x50] sm:$0xff]
    %v1188 = vld [vmem:[#allocation8 + $0x58] sm:$0xff]
    %v1189 = vld [vmem:[#allocation8 + $0x60] sm:$0xff]
    %v1190 = vld [vmem:[#allocation8 + $0x68] sm:$0xff]
    %v1191 = vld [vmem:[#allocation8 + $0x70] sm:$0xff]
    %v1192 = vld [vmem:[#allocation8 + $0x78] sm:$0xff]
    %v1193 = vld [vmem:[#allocation8 + $0x80] sm:$0xff]
    %v1194 = vld [vmem:[#allocation8 + $0x88] sm:$0xff]
    %v1195 = vld [vmem:[#allocation8 + $0x90] sm:$0xff]
    %v1196 = vld [vmem:[#allocation8 + $0x98] sm:$0xff]
    %v1197 = vld [vmem:[#allocation8 + $0xa0] sm:$0xff]
    %v1198 = vld [vmem:[#allocation8 + $0xa8] sm:$0xff]
    %v1199 = vld [vmem:[#allocation8 + $0xb0] sm:$0xff]
    %v1200 = vld [vmem:[#allocation8 + $0xb8] sm:$0xff]
    %v1201 = vld [vmem:[#allocation8 + $0xc0] sm:$0xff]
    %v1202 = vld [vmem:[#allocation8 + $0xc8] sm:$0xff]
    %v1203 = vld [vmem:[#allocation8 + $0xd0] sm:$0xff]
    %v1204 = vld [vmem:[#allocation8 + $0xd8] sm:$0xff]
    %v1205 = vld [vmem:[#allocation8 + $0xe0] sm:$0xff]
    %v1206 = vld [vmem:[#allocation8 + $0xe8] sm:$0xff]
    %v1207 = vld [vmem:[#allocation8 + $0xf0] sm:$0xff]
    %v1208 = vld [vmem:[#allocation8 + $0xf8] sm:$0xff]
    %v1209 = vld [vmem:[#allocation8 + $0x100] sm:$0xff]
    %v1210 = vld [vmem:[#allocation8 + $0x108] sm:$0xff]
    %v1211 = vld [vmem:[#allocation8 + $0x110] sm:$0xff]
    %v1212 = vld [vmem:[#allocation8 + $0x118] sm:$0xff]
    %v1213 = vld [vmem:[#allocation8 + $0x120] sm:$0xff]
    %v1214 = vld [vmem:[#allocation8 + $0x128] sm:$0xff]
    %v1215 = vld [vmem:[#allocation8 + $0x130] sm:$0xff]
    %v1216 = vld [vmem:[#allocation8 + $0x138] sm:$0xff]
    %v1217 = vld [vmem:[#allocation8 + $0x140] sm:$0xff]
    %v1218 = vld [vmem:[#allocation8 + $0x148] sm:$0xff]
    %v1219 = vld [vmem:[#allocation8 + $0x150] sm:$0xff]
    %v1220 = vld [vmem:[#allocation8 + $0x158] sm:$0xff]
    %v1221 = vld [vmem:[#allocation8 + $0x160] sm:$0xff]
    %v1222 = vld [vmem:[#allocation8 + $0x168] sm:$0xff]
    %v1223 = vld [vmem:[#allocation8 + $0x170] sm:$0xff]
    %v1224 = vld [vmem:[#allocation8 + $0x178] sm:$0xff]
    %v1225 = vld [vmem:[#allocation8 + $0x180] sm:$0xff]
    %v1226 = vld [vmem:[#allocation8 + $0x188] sm:$0xff]
    %v1227 = vld [vmem:[#allocation8 + $0x190] sm:$0xff]
    %v1228 = vld [vmem:[#allocation8 + $0x198] sm:$0xff]
    %v1229 = vld [vmem:[#allocation8 + $0x1a0] sm:$0xff]
    %v1230 = vld [vmem:[#allocation8 + $0x1a8] sm:$0xff]
    %v1231 = vld [vmem:[#allocation8 + $0x1b0] sm:$0xff]
    %v1232 = vld [vmem:[#allocation8 + $0x1b8] sm:$0xff]
    %v1233 = vld [vmem:[#allocation8 + $0x1c0] sm:$0xff]
    %v1234 = vld [vmem:[#allocation8 + $0x1c8] sm:$0xff]
    %v1235 = vld [vmem:[#allocation8 + $0x1d0] sm:$0xff]
    %v1236 = vld [vmem:[#allocation8 + $0x1d8] sm:$0xff]
    %v1237 = vld [vmem:[#allocation8 + $0x1e0] sm:$0xff]
    %v1238 = vld [vmem:[#allocation8 + $0x1e8] sm:$0xff]
    %v1239 = vld [vmem:[#allocation8 + $0x1f0] sm:$0xff]
    %v1240 = vld [vmem:[#allocation8 + $0x1f8] sm:$0xff]
    %v1241 = vld [vmem:[#allocation8 + $0x200] sm:$0xff]
    %v1242 = vld [vmem:[#allocation8 + $0x208] sm:$0xff]
    %v1243 = vld [vmem:[#allocation8 + $0x210] sm:$0xff]
    %v1244 = vld [vmem:[#allocation8 + $0x218] sm:$0xff]
    %v1245 = vld [vmem:[#allocation8 + $0x220] sm:$0xff]
    %v1246 = vld [vmem:[#allocation8 + $0x228] sm:$0xff]
    %v1247 = vld [vmem:[#allocation8 + $0x230] sm:$0xff]
    %v1248 = vld [vmem:[#allocation8 + $0x238] sm:$0xff]
    %v1249 = vld [vmem:[#allocation8 + $0x240] sm:$0xff]
    %v1250 = vld [vmem:[#allocation8 + $0x248] sm:$0xff]
    %v1251 = vld [vmem:[#allocation8 + $0x250] sm:$0xff]
    %v1252 = vld [vmem:[#allocation8 + $0x258] sm:$0xff]
    %v1253 = vld [vmem:[#allocation8 + $0x260] sm:$0xff]
    %v1254 = vld [vmem:[#allocation8 + $0x268] sm:$0xff]
    %v1255 = vld [vmem:[#allocation8 + $0x270] sm:$0xff]
    %v1256 = vld [vmem:[#allocation8 + $0x278] sm:$0xff]
    %v1257 = vld [vmem:[#allocation8 + $0x280] sm:$0xff]
    %v1258 = vld [vmem:[#allocation8 + $0x288] sm:$0xff]
    %v1259 = vld [vmem:[#allocation8 + $0x290] sm:$0xff]
    %v1260 = vld [vmem:[#allocation8 + $0x298] sm:$0xff]
    %v1261 = vld [vmem:[#allocation8 + $0x2a0] sm:$0xff]
    %v1262 = vld [vmem:[#allocation8 + $0x2a8] sm:$0xff]
    %v1263 = vld [vmem:[#allocation8 + $0x2b0] sm:$0xff]
    %v1264 = vld [vmem:[#allocation8 + $0x2b8] sm:$0xff]
    %v1265 = vld [vmem:[#allocation8 + $0x2c0] sm:$0xff]
    %v1266 = vld [vmem:[#allocation8 + $0x2c8] sm:$0xff]
    %v1267 = vld [vmem:[#allocation8 + $0x2d0] sm:$0xff]
    %v1268 = vld [vmem:[#allocation8 + $0x2d8] sm:$0xff]
    %v1269 = vld [vmem:[#allocation8 + $0x2e0] sm:$0xff]
    %v1270 = vld [vmem:[#allocation8 + $0x2e8] sm:$0xff]
    %v1271 = vld [vmem:[#allocation8 + $0x2f0] sm:$0xff]
    %v1272 = vld [vmem:[#allocation8 + $0x2f8] sm:$0xff]
    %v1273 = vld [vmem:[#allocation8 + $0x300] sm:$0xff]
    %v1274 = vld [vmem:[#allocation8 + $0x308] sm:$0xff]
    %v1275 = vld [vmem:[#allocation8 + $0x310] sm:$0xff]
    %v1276 = vld [vmem:[#allocation8 + $0x318] sm:$0xff]
    %v1277 = vld [vmem:[#allocation8 + $0x320] sm:$0xff]
    %v1278 = vld [vmem:[#allocation8 + $0x328] sm:$0xff]
    %v1279 = vld [vmem:[#allocation8 + $0x330] sm:$0xff]
    %v1280 = vld [vmem:[#allocation8 + $0x338] sm:$0xff]
    %v1281 = vld [vmem:[#allocation8 + $0x340] sm:$0xff]
    %v1282 = vld [vmem:[#allocation8 + $0x348] sm:$0xff]
    %v1283 = vld [vmem:[#allocation8 + $0x350] sm:$0xff]
    %v1284 = vld [vmem:[#allocation8 + $0x358] sm:$0xff]
    %v1285 = vld [vmem:[#allocation8 + $0x360] sm:$0xff]
    %v1286 = vld [vmem:[#allocation8 + $0x368] sm:$0xff]
    %v1287 = vld [vmem:[#allocation8 + $0x370] sm:$0xff]
    %v1288 = vld [vmem:[#allocation8 + $0x378] sm:$0xff]
    %v1289 = vld [vmem:[#allocation8 + $0x380] sm:$0xff]
    %v1290 = vld [vmem:[#allocation8 + $0x388] sm:$0xff]
    %v1291 = vld [vmem:[#allocation8 + $0x390] sm:$0xff]
    %v1292 = vld [vmem:[#allocation8 + $0x398] sm:$0xff]
    %v1293 = vld [vmem:[#allocation8 + $0x3a0] sm:$0xff]
    %v1294 = vld [vmem:[#allocation8 + $0x3a8] sm:$0xff]
    %v1295 = vld [vmem:[#allocation8 + $0x3b0] sm:$0xff]
    %v1296 = vld [vmem:[#allocation8 + $0x3b8] sm:$0xff]
    %v1297 = vld [vmem:[#allocation8 + $0x3c0] sm:$0xff]
    %v1298 = vld [vmem:[#allocation8 + $0x3c8] sm:$0xff]
    %v1299 = vld [vmem:[#allocation8 + $0x3d0] sm:$0xff]
    %v1300 = vld [vmem:[#allocation8 + $0x3d8] sm:$0xff]
    %v1301 = vld [vmem:[#allocation8 + $0x3e0] sm:$0xff]
    %v1302 = vld [vmem:[#allocation8 + $0x3e8] sm:$0xff]
    %v1303 = vld [vmem:[#allocation8 + $0x3f0] sm:$0xff]
    %v1304 = vld [vmem:[#allocation8 + $0x3f8] sm:$0xff]
    %v1305 = vld [vmem:[#allocation8 + $0x400] sm:$0xff]
    %v1306 = vld [vmem:[#allocation8 + $0x408] sm:$0xff]
    %v1307 = vld [vmem:[#allocation8 + $0x410] sm:$0xff]
    %v1308 = vld [vmem:[#allocation8 + $0x418] sm:$0xff]
    %v1309 = vld [vmem:[#allocation8 + $0x420] sm:$0xff]
    %v1310 = vld [vmem:[#allocation8 + $0x428] sm:$0xff]
    %v1311 = vld [vmem:[#allocation8 + $0x430] sm:$0xff]
    %v1312 = vld [vmem:[#allocation8 + $0x438] sm:$0xff]
    %v1313 = vld [vmem:[#allocation8 + $0x440] sm:$0xff]
    %v1314 = vld [vmem:[#allocation8 + $0x448] sm:$0xff]
    %v1315 = vld [vmem:[#allocation8 + $0x450] sm:$0xff]
    %v1316 = vld [vmem:[#allocation8 + $0x458] sm:$0xff]
    %v1317 = vld [vmem:[#allocation8 + $0x460] sm:$0xff]
    %v1318 = vld [vmem:[#allocation8 + $0x468] sm:$0xff]
    %v1319 = vld [vmem:[#allocation8 + $0x470] sm:$0xff]
    %v1320 = vld [vmem:[#allocation8 + $0x478] sm:$0xff]
    %v1321 = vld [vmem:[#allocation8 + $0x480] sm:$0xff]
    %v1322 = vld [vmem:[#allocation8 + $0x488] sm:$0xff]
    %v1323 = vld [vmem:[#allocation8 + $0x490] sm:$0xff]
    %v1324 = vld [vmem:[#allocation8 + $0x498] sm:$0xff]
    %v1325 = vld [vmem:[#allocation8 + $0x4a0] sm:$0xff]
    %v1326 = vld [vmem:[#allocation8 + $0x4a8] sm:$0xff]
    %v1327 = vld [vmem:[#allocation8 + $0x4b0] sm:$0xff]
    %v1328 = vld [vmem:[#allocation8 + $0x4b8] sm:$0xff]
    %v1329 = vld [vmem:[#allocation8 + $0x4c0] sm:$0xff]
    %v1330 = vld [vmem:[#allocation8 + $0x4c8] sm:$0xff]
    %v1331 = vld [vmem:[#allocation8 + $0x4d0] sm:$0xff]
    %v1332 = vld [vmem:[#allocation8 + $0x4d8] sm:$0xff]
    %v1333 = vld [vmem:[#allocation8 + $0x4e0] sm:$0xff]
    %v1334 = vld [vmem:[#allocation8 + $0x4e8] sm:$0xff]
    %v1335 = vld [vmem:[#allocation8 + $0x4f0] sm:$0xff]
    %v1336 = vld [vmem:[#allocation8 + $0x4f8] sm:$0xff]
    %v1337 = vld [vmem:[#allocation8 + $0x500] sm:$0xff]
    %v1338 = vld [vmem:[#allocation8 + $0x508] sm:$0xff]
    %v1339 = vld [vmem:[#allocation8 + $0x510] sm:$0xff]
    %v1340 = vld [vmem:[#allocation8 + $0x518] sm:$0xff]
    %v1341 = vld [vmem:[#allocation8 + $0x520] sm:$0xff]
    %v1342 = vld [vmem:[#allocation8 + $0x528] sm:$0xff]
    %v1343 = vld [vmem:[#allocation8 + $0x530] sm:$0xff]
    %v1344 = vld [vmem:[#allocation8 + $0x538] sm:$0xff]
    %v1345 = vld [vmem:[#allocation8 + $0x540] sm:$0xff]
    %v1346 = vld [vmem:[#allocation8 + $0x548] sm:$0xff]
    %v1347 = vld [vmem:[#allocation8 + $0x550] sm:$0xff]
    %v1348 = vld [vmem:[#allocation8 + $0x558] sm:$0xff]
    %v1349 = vld [vmem:[#allocation8 + $0x560] sm:$0xff]
    %v1350 = vld [vmem:[#allocation8 + $0x568] sm:$0xff]
    %v1351 = vld [vmem:[#allocation8 + $0x570] sm:$0xff]
    %v1352 = vld [vmem:[#allocation8 + $0x578] sm:$0xff]
    %v1353 = vld [vmem:[#allocation8 + $0x580] sm:$0xff]
    %v1354 = vld [vmem:[#allocation8 + $0x588] sm:$0xff]
    %v1355 = vld [vmem:[#allocation8 + $0x590] sm:$0xff]
    %v1356 = vld [vmem:[#allocation8 + $0x598] sm:$0xff]
    %v1357 = vld [vmem:[#allocation8 + $0x5a0] sm:$0xff]
    %v1358 = vld [vmem:[#allocation8 + $0x5a8] sm:$0xff]
    %v1359 = vld [vmem:[#allocation8 + $0x5b0] sm:$0xff]
    %v1360 = vld [vmem:[#allocation8 + $0x5b8] sm:$0xff]
    %v1361 = vld [vmem:[#allocation8 + $0x5c0] sm:$0xff]
    %v1362 = vld [vmem:[#allocation8 + $0x5c8] sm:$0xff]
    %v1363 = vld [vmem:[#allocation8 + $0x5d0] sm:$0xff]
    %v1364 = vld [vmem:[#allocation8 + $0x5d8] sm:$0xff]
    %v1365 = vld [vmem:[#allocation8 + $0x5e0] sm:$0xff]
    %v1366 = vld [vmem:[#allocation8 + $0x5e8] sm:$0xff]
    %v1367 = vld [vmem:[#allocation8 + $0x5f0] sm:$0xff]
    %v1368 = vld [vmem:[#allocation8 + $0x5f8] sm:$0xff]
    %v1369 = vld [vmem:[#allocation8 + $0x600] sm:$0xff]
    %v1370 = vld [vmem:[#allocation8 + $0x608] sm:$0xff]
    %v1371 = vld [vmem:[#allocation8 + $0x610] sm:$0xff]
    %v1372 = vld [vmem:[#allocation8 + $0x618] sm:$0xff]
    %v1373 = vld [vmem:[#allocation8 + $0x620] sm:$0xff]
    %v1374 = vld [vmem:[#allocation8 + $0x628] sm:$0xff]
    %v1375 = vld [vmem:[#allocation8 + $0x630] sm:$0xff]
    %v1376 = vld [vmem:[#allocation8 + $0x638] sm:$0xff]
    %v1377 = vld [vmem:[#allocation8 + $0x640] sm:$0xff]
    %v1378 = vld [vmem:[#allocation8 + $0x648] sm:$0xff]
    %v1379 = vld [vmem:[#allocation8 + $0x650] sm:$0xff]
    %v1380 = vld [vmem:[#allocation8 + $0x658] sm:$0xff]
    %v1381 = vld [vmem:[#allocation8 + $0x660] sm:$0xff]
    %v1382 = vld [vmem:[#allocation8 + $0x668] sm:$0xff]
    %v1383 = vld [vmem:[#allocation8 + $0x670] sm:$0xff]
    %v1384 = vld [vmem:[#allocation8 + $0x678] sm:$0xff]
    %v1385 = vld [vmem:[#allocation8 + $0x680] sm:$0xff]
    %v1386 = vld [vmem:[#allocation8 + $0x688] sm:$0xff]
    %v1387 = vld [vmem:[#allocation8 + $0x690] sm:$0xff]
    %v1388 = vld [vmem:[#allocation8 + $0x698] sm:$0xff]
    %v1389 = vld [vmem:[#allocation8 + $0x6a0] sm:$0xff]
    %v1390 = vld [vmem:[#allocation8 + $0x6a8] sm:$0xff]
    %v1391 = vld [vmem:[#allocation8 + $0x6b0] sm:$0xff]
    %v1392 = vld [vmem:[#allocation8 + $0x6b8] sm:$0xff]
    %v1393 = vld [vmem:[#allocation8 + $0x6c0] sm:$0xff]
    %v1394 = vld [vmem:[#allocation8 + $0x6c8] sm:$0xff]
    %v1395 = vld [vmem:[#allocation8 + $0x6d0] sm:$0xff]
    %v1396 = vld [vmem:[#allocation8 + $0x6d8] sm:$0xff]
    %v1397 = vld [vmem:[#allocation8 + $0x6e0] sm:$0xff]
    %v1398 = vld [vmem:[#allocation8 + $0x6e8] sm:$0xff]
    %v1399 = vld [vmem:[#allocation8 + $0x6f0] sm:$0xff]
    %v1400 = vld [vmem:[#allocation8 + $0x6f8] sm:$0xff]
    %v1401 = vld [vmem:[#allocation8 + $0x700] sm:$0xff]
    %v1402 = vld [vmem:[#allocation8 + $0x708] sm:$0xff]
    %v1403 = vld [vmem:[#allocation8 + $0x710] sm:$0xff]
    %v1404 = vld [vmem:[#allocation8 + $0x718] sm:$0xff]
    %v1405 = vld [vmem:[#allocation8 + $0x720] sm:$0xff]
    %v1406 = vld [vmem:[#allocation8 + $0x728] sm:$0xff]
    %v1407 = vld [vmem:[#allocation8 + $0x730] sm:$0xff]
    %v1408 = vld [vmem:[#allocation8 + $0x738] sm:$0xff]
    %v1409 = vld [vmem:[#allocation8 + $0x740] sm:$0xff]
    %v1410 = vld [vmem:[#allocation8 + $0x748] sm:$0xff]
    %v1411 = vld [vmem:[#allocation8 + $0x750] sm:$0xff]
    %v1412 = vld [vmem:[#allocation8 + $0x758] sm:$0xff]
    %v1413 = vld [vmem:[#allocation8 + $0x760] sm:$0xff]
    %v1414 = vld [vmem:[#allocation8 + $0x768] sm:$0xff]
    %v1415 = vld [vmem:[#allocation8 + $0x770] sm:$0xff]
    %v1416 = vld [vmem:[#allocation8 + $0x778] sm:$0xff]
    %v1417 = vld [vmem:[#allocation10] sm:$0x7]
    %v1419 = vlaneseq
    %v1420 = vshrl.u32 %v1419, 7
    %v1421 = vsub.s32 0, %v1420
    %v1422 = vrot.slane %v1417, %v1421
    %v1423 = vlaneseq
    %v1424 = vshrl.u32 %v1423, 7
    %v1425 = vsub.s32 1, %v1424
    %v1426 = vrot.slane %v1417, %v1425
    %v1427 = vlaneseq
    %v1428 = vshrl.u32 %v1427, 7
    %v1429 = vsub.s32 2, %v1428
    %v1430 = vrot.slane %v1417, %v1429
    %1434 = vmatprep.subr.mxu0 %v1178
    %1435 = vmatpush1.msra.mxu0 %v1177
    %1436 = vmatprep.subr.mxu0 %v1181
    %1437 = vmatpush1.msra.mxu0 %v1180
    %1438 = vmatprep.subr.mxu0 %v1184
    %1439 = vmatpush1.msra.mxu0 %v1183
    %1440 = vmatprep.subr.mxu0 %v1187
    %1441 = vmatpush1.msra.mxu0 %v1186
    %1442 = vmatprep.subr.mxu0 %v1190
    %1443 = vmatpush1.msra.mxu0 %v1189
    %1444 = vmatprep.subr.mxu0 %v1193
    %1445 = vmatpush1.msra.mxu0 %v1192
    %1446 = vmatprep.subr.mxu0 %v1196
    %1447 = vmatpush1.msra.mxu0 %v1195
    %1448 = vmatprep.subr.mxu0 %v1199
    %1449 = vmatpush1.msra.mxu0 %v1198
    %1450 = vmatprep.subr.mxu0 %v1202
    %1451 = vmatpush1.msra.mxu0 %v1201
    %1452 = vmatprep.subr.mxu0 %v1205
    %1453 = vmatpush1.msra.mxu0 %v1204
    %1454 = vmatprep.subr.mxu0 %v1208
    %1455 = vmatpush1.msra.mxu0 %v1207
    %1456 = vmatprep.subr.mxu0 %v1211
    %1457 = vmatpush1.msra.mxu0 %v1210
    %1458 = vmatprep.subr.mxu0 %v1214
    %1459 = vmatpush1.msra.mxu0 %v1213
    %1460 = vmatprep.subr.mxu0 %v1217
    %1461 = vmatpush1.msra.mxu0 %v1216
    %1462 = vmatprep.subr.mxu0 %v1220
    %1463 = vmatpush1.msra.mxu0 %v1219
    %1464 = vmatprep.subr.mxu0 %v1223
    %1465 = vmatpush1.msra.mxu0 %v1222
    %1466 = vmatprep.subr.mxu0 %v1226
    %1467 = vmatpush1.msra.mxu0 %v1225
    %1468 = vmatprep.subr.mxu0 %v1229
    %1469 = vmatpush1.msra.mxu0 %v1228
    %1470 = vmatprep.subr.mxu0 %v1232
    %1471 = vmatpush1.msra.mxu0 %v1231
    %1472 = vmatprep.subr.mxu0 %v1235
    %1473 = vmatpush1.msra.mxu0 %v1234
    %1474 = vmatprep.subr.mxu0 %v1238
    %1475 = vmatpush1.msra.mxu0 %v1237
    %1476 = vmatprep.subr.mxu0 %v1241
    %1477 = vmatpush1.msra.mxu0 %v1240
    %1478 = vmatprep.subr.mxu0 %v1244
    %1479 = vmatpush1.msra.mxu0 %v1243
    %1480 = vmatprep.subr.mxu0 %v1247
    %1481 = vmatpush1.msra.mxu0 %v1246
    %1482 = vmatprep.subr.mxu0 %v1250
    %1483 = vmatpush1.msra.mxu0 %v1249
    %1484 = vmatprep.subr.mxu0 %v1253
    %1485 = vmatpush1.msra.mxu0 %v1252
    %1486 = vmatprep.subr.mxu0 %v1256
    %1487 = vmatpush1.msra.mxu0 %v1255
    %1488 = vmatprep.subr.mxu0 %v1259
    %1489 = vmatpush1.msra.mxu0 %v1258
    %1490 = vmatprep.subr.mxu0 %v1262
    %1491 = vmatpush1.msra.mxu0 %v1261
    %1492 = vmatprep.subr.mxu0 %v1265
    %1493 = vmatpush1.msra.mxu0 %v1264
    %1494 = vmatprep.subr.mxu0 %v1268
    %1495 = vmatpush1.msra.mxu0 %v1267
    %1496 = vmatprep.subr.mxu0 %v1271
    %1497 = vmatpush1.msra.mxu0 %v1270
    %1498 = vmatprep.mubr.f32.mxu0 %v1173
    %1499 = vmatmul.mubr.f32.gmra.mrb[0].mxu0 %v1172
    %v1500 = vpop.f32.mrb[0].mxu0
    %v1501 = vadd.f32 %v1422, %v1500
    %v1502 = vpop.f32.mrb[0].mxu0
    %v1503 = vadd.f32 %v1426, %v1502
    %1504 = vdwg.mxu0
    %1505 = vmatprep.subr.mxu0 %v1274
    %1506 = vmatpush1.msra.mxu0 %v1273
    %1507 = vmatprep.subr.mxu0 %v1277
    %1508 = vmatpush1.msra.mxu0 %v1276
    %1509 = vmatprep.subr.mxu0 %v1280
    %1510 = vmatpush1.msra.mxu0 %v1279
    %1511 = vmatprep.subr.mxu0 %v1283
    %1512 = vmatpush1.msra.mxu0 %v1282
    %1513 = vmatprep.subr.mxu0 %v1286
    %1514 = vmatpush1.msra.mxu0 %v1285
    %1515 = vmatprep.subr.mxu0 %v1289
    %1516 = vmatpush1.msra.mxu0 %v1288
    %1517 = vmatprep.subr.mxu0 %v1292
    %1518 = vmatpush1.msra.mxu0 %v1291
    %1519 = vmatprep.subr.mxu0 %v1295
    %1520 = vmatpush1.msra.mxu0 %v1294
    %1521 = vmatprep.subr.mxu0 %v1298
    %1522 = vmatpush1.msra.mxu0 %v1297
    %1523 = vmatprep.subr.mxu0 %v1301
    %1524 = vmatpush1.msra.mxu0 %v1300
    %1525 = vmatprep.subr.mxu0 %v1304
    %1526 = vmatpush1.msra.mxu0 %v1303
    %1527 = vmatprep.subr.mxu0 %v1307
    %1528 = vmatpush1.msra.mxu0 %v1306
    %1529 = vmatprep.subr.mxu0 %v1310
    %1530 = vmatpush1.msra.mxu0 %v1309
    %1531 = vmatprep.subr.mxu0 %v1313
    %1532 = vmatpush1.msra.mxu0 %v1312
    %1533 = vmatprep.subr.mxu0 %v1316
    %1534 = vmatpush1.msra.mxu0 %v1315
    %1535 = vmatprep.subr.mxu0 %v1319
    %1536 = vmatpush1.msra.mxu0 %v1318
    %1537 = vmatprep.subr.mxu0 %v1322
    %1538 = vmatpush1.msra.mxu0 %v1321
    %1539 = vmatprep.subr.mxu0 %v1325
    %1540 = vmatpush1.msra.mxu0 %v1324
    %1541 = vmatprep.subr.mxu0 %v1328
    %1542 = vmatpush1.msra.mxu0 %v1327
    %1543 = vmatprep.subr.mxu0 %v1331
    %1544 = vmatpush1.msra.mxu0 %v1330
    %1545 = vmatprep.subr.mxu0 %v1334
    %1546 = vmatpush1.msra.mxu0 %v1333
    %1547 = vmatprep.subr.mxu0 %v1337
    %1548 = vmatpush1.msra.mxu0 %v1336
    %1549 = vmatprep.subr.mxu0 %v1340
    %1550 = vmatpush1.msra.mxu0 %v1339
    %1551 = vmatprep.subr.mxu0 %v1343
    %1552 = vmatpush1.msra.mxu0 %v1342
    %1553 = vmatprep.subr.mxu0 %v1346
    %1554 = vmatpush1.msra.mxu0 %v1345
    %1555 = vmatprep.subr.mxu0 %v1349
    %1556 = vmatpush1.msra.mxu0 %v1348
    %1557 = vmatprep.subr.mxu0 %v1352
    %1558 = vmatpush1.msra.mxu0 %v1351
    %1559 = vmatprep.subr.mxu0 %v1355
    %1560 = vmatpush1.msra.mxu0 %v1354
    %1561 = vmatprep.subr.mxu0 %v1358
    %1562 = vmatpush1.msra.mxu0 %v1357
    %1563 = vmatprep.subr.mxu0 %v1361
    %1564 = vmatpush1.msra.mxu0 %v1360
    %1565 = vmatprep.subr.mxu0 %v1364
    %1566 = vmatpush1.msra.mxu0 %v1363
    %1567 = vmatprep.subr.mxu0 %v1367
    %1568 = vmatpush1.msra.mxu0 %v1366
    %1569 = vmatprep.mubr.f32.mxu0 %v1175
    %1570 = vmatmul.mubr.f32.gmra.mrb[0].mxu0 %v1174
    %v1571 = vpop.f32.mrb[0].mxu0
    %v1572 = vadd.f32 %v1501, %v1571
    %v1573 = vpop.f32.mrb[0].mxu0
    %v1574 = vadd.f32 %v1503, %v1573
    %1575 = vdwg.mxu0
    %1576 = vmatprep.subr.mxu0 %v1370
    %1577 = vmatpush1.msra.mxu0 %v1369
    %1578 = vmatprep.subr.mxu0 %v1373
    %1579 = vmatpush1.msra.mxu0 %v1372
    %1580 = vmatprep.subr.mxu0 %v1376
    %1581 = vmatpush1.msra.mxu0 %v1375
    %1582 = vmatprep.subr.mxu0 %v1379
    %1583 = vmatpush1.msra.mxu0 %v1378
    %1584 = vmatprep.subr.mxu0 %v1382
    %1585 = vmatpush1.msra.mxu0 %v1381
    %1586 = vmatprep.subr.mxu0 %v1385
    %1587 = vmatpush1.msra.mxu0 %v1384
    %1588 = vmatprep.subr.mxu0 %v1388
    %1589 = vmatpush1.msra.mxu0 %v1387
    %1590 = vmatprep.subr.mxu0 %v1391
    %1591 = vmatpush1.msra.mxu0 %v1390
    %1592 = vmatprep.subr.mxu0 %v1394
    %1593 = vmatpush1.msra.mxu0 %v1393
    %1594 = vmatprep.subr.mxu0 %v1397
    %1595 = vmatpush1.msra.mxu0 %v1396
    %1596 = vmatprep.subr.mxu0 %v1400
    %1597 = vmatpush1.msra.mxu0 %v1399
    %1598 = vmatprep.subr.mxu0 %v1403
    %1599 = vmatpush1.msra.mxu0 %v1402
    %1600 = vmatprep.subr.mxu0 %v1406
    %1601 = vmatpush1.msra.mxu0 %v1405
    %1602 = vmatprep.subr.mxu0 %v1409
    %1603 = vmatpush1.msra.mxu0 %v1408
    %1604 = vmatprep.subr.mxu0 %v1412
    %1605 = vmatpush1.msra.mxu0 %v1411
    %1606 = vmatprep.subr.mxu0 %v1415
    %1607 = vmatpush1.msra.mxu0 %v1414
    %1608 = vmatprep.subr.mxu0 0.0
    %1609 = vmatpush1.msra.mxu0 0.0
    %1610 = vmatprep.subr.mxu0 0.0
    %1611 = vmatpush1.msra.mxu0 0.0
    %1612 = vmatprep.subr.mxu0 0.0
    %1613 = vmatpush1.msra.mxu0 0.0
    %1614 = vmatprep.subr.mxu0 0.0
    %1615 = vmatpush1.msra.mxu0 0.0
    %1616 = vmatprep.subr.mxu0 0.0
    %1617 = vmatpush1.msra.mxu0 0.0
    %1618 = vmatprep.subr.mxu0 0.0
    %1619 = vmatpush1.msra.mxu0 0.0
    %1620 = vmatprep.subr.mxu0 0.0
    %1621 = vmatpush1.msra.mxu0 0.0
    %1622 = vmatprep.subr.mxu0 0.0
    %1623 = vmatpush1.msra.mxu0 0.0
    %1624 = vmatprep.subr.mxu0 0.0
    %1625 = vmatpush1.msra.mxu0 0.0
    %1626 = vmatprep.subr.mxu0 0.0
    %1627 = vmatpush1.msra.mxu0 0.0
    %1628 = vmatprep.subr.mxu0 0.0
    %1629 = vmatpush1.msra.mxu0 0.0
    %1630 = vmatprep.subr.mxu0 0.0
    %1631 = vmatpush1.msra.mxu0 0.0
    %1632 = vmatprep.subr.mxu0 0.0
    %1633 = vmatpush1.msra.mxu0 0.0
    %1634 = vmatprep.subr.mxu0 0.0
    %1635 = vmatpush1.msra.mxu0 0.0
    %1636 = vmatprep.subr.mxu0 0.0
    %1637 = vmatpush1.msra.mxu0 0.0
    %1638 = vmatprep.subr.mxu0 0.0
    %1639 = vmatpush1.msra.mxu0 0.0
    %1640 = vmatprep.mubr.f32.mxu0 0.0
    %1641 = vmatmul.mubr.f32.gmra.mrb[0].mxu0 %v1176
    %v1642 = vpop.f32.mrb[0].mxu0
    %v1643 = vadd.f32 %v1572, %v1642
    %v1644 = vpop.f32.mrb[0].mxu0
    %v1645 = vadd.f32 %v1574, %v1644
    %1646 = vdwg.mxu0
    %1647 = vmatprep.subr.mxu0 0.0
    %1648 = vmatpush1.msra.mxu0 %v1179
    %1649 = vmatprep.subr.mxu0 0.0
    %1650 = vmatpush1.msra.mxu0 %v1182
    %1651 = vmatprep.subr.mxu0 0.0
    %1652 = vmatpush1.msra.mxu0 %v1185
    %1653 = vmatprep.subr.mxu0 0.0
    %1654 = vmatpush1.msra.mxu0 %v1188
    %1655 = vmatprep.subr.mxu0 0.0
    %1656 = vmatpush1.msra.mxu0 %v1191
    %1657 = vmatprep.subr.mxu0 0.0
    %1658 = vmatpush1.msra.mxu0 %v1194
    %1659 = vmatprep.subr.mxu0 0.0
    %1660 = vmatpush1.msra.mxu0 %v1197
    %1661 = vmatprep.subr.mxu0 0.0
    %1662 = vmatpush1.msra.mxu0 %v1200
    %1663 = vmatprep.subr.mxu0 0.0
    %1664 = vmatpush1.msra.mxu0 %v1203
    %1665 = vmatprep.subr.mxu0 0.0
    %1666 = vmatpush1.msra.mxu0 %v1206
    %1667 = vmatprep.subr.mxu0 0.0
    %1668 = vmatpush1.msra.mxu0 %v1209
    %1669 = vmatprep.subr.mxu0 0.0
    %1670 = vmatpush1.msra.mxu0 %v1212
    %1671 = vmatprep.subr.mxu0 0.0
    %1672 = vmatpush1.msra.mxu0 %v1215
    %1673 = vmatprep.subr.mxu0 0.0
    %1674 = vmatpush1.msra.mxu0 %v1218
    %1675 = vmatprep.subr.mxu0 0.0
    %1676 = vmatpush1.msra.mxu0 %v1221
    %1677 = vmatprep.subr.mxu0 0.0
    %1678 = vmatpush1.msra.mxu0 %v1224
    %1679 = vmatprep.subr.mxu0 0.0
    %1680 = vmatpush1.msra.mxu0 %v1227
    %1681 = vmatprep.subr.mxu0 0.0
    %1682 = vmatpush1.msra.mxu0 %v1230
    %1683 = vmatprep.subr.mxu0 0.0
    %1684 = vmatpush1.msra.mxu0 %v1233
    %1685 = vmatprep.subr.mxu0 0.0
    %1686 = vmatpush1.msra.mxu0 %v1236
    %1687 = vmatprep.subr.mxu0 0.0
    %1688 = vmatpush1.msra.mxu0 %v1239
    %1689 = vmatprep.subr.mxu0 0.0
    %1690 = vmatpush1.msra.mxu0 %v1242
    %1691 = vmatprep.subr.mxu0 0.0
    %1692 = vmatpush1.msra.mxu0 %v1245
    %1693 = vmatprep.subr.mxu0 0.0
    %1694 = vmatpush1.msra.mxu0 %v1248
    %1695 = vmatprep.subr.mxu0 0.0
    %1696 = vmatpush1.msra.mxu0 %v1251
    %1697 = vmatprep.subr.mxu0 0.0
    %1698 = vmatpush1.msra.mxu0 %v1254
    %1699 = vmatprep.subr.mxu0 0.0
    %1700 = vmatpush1.msra.mxu0 %v1257
    %1701 = vmatprep.subr.mxu0 0.0
    %1702 = vmatpush1.msra.mxu0 %v1260
    %1703 = vmatprep.subr.mxu0 0.0
    %1704 = vmatpush1.msra.mxu0 %v1263
    %1705 = vmatprep.subr.mxu0 0.0
    %1706 = vmatpush1.msra.mxu0 %v1266
    %1707 = vmatprep.subr.mxu0 0.0
    %1708 = vmatpush1.msra.mxu0 %v1269
    %1709 = vmatprep.subr.mxu0 0.0
    %1710 = vmatpush1.msra.mxu0 %v1272
    %1711 = vmatprep.mubr.f32.mxu0 %v1173
    %1712 = vmatmul.mubr.f32.gmra.mrb[0].mxu0 %v1172
    %v1713 = vpop.f32.mrb[0].mxu0
    %v1714 = vadd.f32 %v1430, %v1713
    %v1715 = vpop.f32.mrb[0].mxu0
    %1716 = vdwg.mxu0
    %1717 = vmatprep.subr.mxu0 0.0
    %1718 = vmatpush1.msra.mxu0 %v1275
    %1719 = vmatprep.subr.mxu0 0.0
    %1720 = vmatpush1.msra.mxu0 %v1278
    %1721 = vmatprep.subr.mxu0 0.0
    %1722 = vmatpush1.msra.mxu0 %v1281
    %1723 = vmatprep.subr.mxu0 0.0
    %1724 = vmatpush1.msra.mxu0 %v1284
    %1725 = vmatprep.subr.mxu0 0.0
    %1726 = vmatpush1.msra.mxu0 %v1287
    %1727 = vmatprep.subr.mxu0 0.0
    %1728 = vmatpush1.msra.mxu0 %v1290
    %1729 = vmatprep.subr.mxu0 0.0
    %1730 = vmatpush1.msra.mxu0 %v1293
    %1731 = vmatprep.subr.mxu0 0.0
    %1732 = vmatpush1.msra.mxu0 %v1296
    %1733 = vmatprep.subr.mxu0 0.0
    %1734 = vmatpush1.msra.mxu0 %v1299
    %1735 = vmatprep.subr.mxu0 0.0
    %1736 = vmatpush1.msra.mxu0 %v1302
    %1737 = vmatprep.subr.mxu0 0.0
    %1738 = vmatpush1.msra.mxu0 %v1305
    %1739 = vmatprep.subr.mxu0 0.0
    %1740 = vmatpush1.msra.mxu0 %v1308
    %1741 = vmatprep.subr.mxu0 0.0
    %1742 = vmatpush1.msra.mxu0 %v1311
    %1743 = vmatprep.subr.mxu0 0.0
    %1744 = vmatpush1.msra.mxu0 %v1314
    %1745 = vmatprep.subr.mxu0 0.0
    %1746 = vmatpush1.msra.mxu0 %v1317
    %1747 = vmatprep.subr.mxu0 0.0
    %1748 = vmatpush1.msra.mxu0 %v1320
    %1749 = vmatprep.subr.mxu0 0.0
    %1750 = vmatpush1.msra.mxu0 %v1323
    %1751 = vmatprep.subr.mxu0 0.0
    %1752 = vmatpush1.msra.mxu0 %v1326
    %1753 = vmatprep.subr.mxu0 0.0
    %1754 = vmatpush1.msra.mxu0 %v1329
    %1755 = vmatprep.subr.mxu0 0.0
    %1756 = vmatpush1.msra.mxu0 %v1332
    %1757 = vmatprep.subr.mxu0 0.0
    %1758 = vmatpush1.msra.mxu0 %v1335
    %1759 = vmatprep.subr.mxu0 0.0
    %1760 = vmatpush1.msra.mxu0 %v1338
    %1761 = vmatprep.subr.mxu0 0.0
    %1762 = vmatpush1.msra.mxu0 %v1341
    %1763 = vmatprep.subr.mxu0 0.0
    %1764 = vmatpush1.msra.mxu0 %v1344
    %1765 = vmatprep.subr.mxu0 0.0
    %1766 = vmatpush1.msra.mxu0 %v1347
    %1767 = vmatprep.subr.mxu0 0.0
    %1768 = vmatpush1.msra.mxu0 %v1350
    %1769 = vmatprep.subr.mxu0 0.0
    %1770 = vmatpush1.msra.mxu0 %v1353
    %1771 = vmatprep.subr.mxu0 0.0
    %1772 = vmatpush1.msra.mxu0 %v1356
    %1773 = vmatprep.subr.mxu0 0.0
    %1774 = vmatpush1.msra.mxu0 %v1359
    %1775 = vmatprep.subr.mxu0 0.0
    %1776 = vmatpush1.msra.mxu0 %v1362
    %1777 = vmatprep.subr.mxu0 0.0
    %1778 = vmatpush1.msra.mxu0 %v1365
    %1779 = vmatprep.subr.mxu0 0.0
    %1780 = vmatpush1.msra.mxu0 %v1368
    %1781 = vmatprep.mubr.f32.mxu0 %v1175
    %1782 = vmatmul.mubr.f32.gmra.mrb[0].mxu0 %v1174
    %v1783 = vpop.f32.mrb[0].mxu0
    %v1784 = vadd.f32 %v1714, %v1783
    %v1785 = vpop.f32.mrb[0].mxu0
    %1786 = vdwg.mxu0
    %1787 = vmatprep.subr.mxu0 0.0
    %1788 = vmatpush1.msra.mxu0 %v1371
    %1789 = vmatprep.subr.mxu0 0.0
    %1790 = vmatpush1.msra.mxu0 %v1374
    %1791 = vmatprep.subr.mxu0 0.0
    %1792 = vmatpush1.msra.mxu0 %v1377
    %1793 = vmatprep.subr.mxu0 0.0
    %1794 = vmatpush1.msra.mxu0 %v1380
    %1795 = vmatprep.subr.mxu0 0.0
    %1796 = vmatpush1.msra.mxu0 %v1383
    %1797 = vmatprep.subr.mxu0 0.0
    %1798 = vmatpush1.msra.mxu0 %v1386
    %1799 = vmatprep.subr.mxu0 0.0
    %1800 = vmatpush1.msra.mxu0 %v1389
    %1801 = vmatprep.subr.mxu0 0.0
    %1802 = vmatpush1.msra.mxu0 %v1392
    %1803 = vmatprep.subr.mxu0 0.0
    %1804 = vmatpush1.msra.mxu0 %v1395
    %1805 = vmatprep.subr.mxu0 0.0
    %1806 = vmatpush1.msra.mxu0 %v1398
    %1807 = vmatprep.subr.mxu0 0.0
    %1808 = vmatpush1.msra.mxu0 %v1401
    %1809 = vmatprep.subr.mxu0 0.0
    %1810 = vmatpush1.msra.mxu0 %v1404
    %1811 = vmatprep.subr.mxu0 0.0
    %1812 = vmatpush1.msra.mxu0 %v1407
    %1813 = vmatprep.subr.mxu0 0.0
    %1814 = vmatpush1.msra.mxu0 %v1410
    %1815 = vmatprep.subr.mxu0 0.0
    %1816 = vmatpush1.msra.mxu0 %v1413
    %1817 = vmatprep.subr.mxu0 0.0
    %1818 = vmatpush1.msra.mxu0 %v1416
    %1819 = vmatprep.subr.mxu0 0.0
    %1820 = vmatpush1.msra.mxu0 0.0
    %1821 = vmatprep.subr.mxu0 0.0
    %1822 = vmatpush1.msra.mxu0 0.0
    %1823 = vmatprep.subr.mxu0 0.0
    %1824 = vmatpush1.msra.mxu0 0.0
    %1825 = vmatprep.subr.mxu0 0.0
    %1826 = vmatpush1.msra.mxu0 0.0
    %1827 = vmatprep.subr.mxu0 0.0
    %1828 = vmatpush1.msra.mxu0 0.0
    %1829 = vmatprep.subr.mxu0 0.0
    %1830 = vmatpush1.msra.mxu0 0.0
    %1831 = vmatprep.subr.mxu0 0.0
    %1832 = vmatpush1.msra.mxu0 0.0
    %1833 = vmatprep.subr.mxu0 0.0
    %1834 = vmatpush1.msra.mxu0 0.0
    %1835 = vmatprep.subr.mxu0 0.0
    %1836 = vmatpush1.msra.mxu0 0.0
    %1837 = vmatprep.subr.mxu0 0.0
    %1838 = vmatpush1.msra.mxu0 0.0
    %1839 = vmatprep.subr.mxu0 0.0
    %1840 = vmatpush1.msra.mxu0 0.0
    %1841 = vmatprep.subr.mxu0 0.0
    %1842 = vmatpush1.msra.mxu0 0.0
    %1843 = vmatprep.subr.mxu0 0.0
    %1844 = vmatpush1.msra.mxu0 0.0
    %1845 = vmatprep.subr.mxu0 0.0
    %1846 = vmatpush1.msra.mxu0 0.0
    %1847 = vmatprep.subr.mxu0 0.0
    %1848 = vmatpush1.msra.mxu0 0.0
    %1849 = vmatprep.subr.mxu0 0.0
    %1850 = vmatpush1.msra.mxu0 0.0
    %1851 = vmatprep.mubr.f32.mxu0 0.0
    %1852 = vmatmul.mubr.f32.gmra.mrb[0].mxu0 %v1176
    %v1853 = vpop.f32.mrb[0].mxu0
    %v1854 = vadd.f32 %v1784, %v1853
    %v1855 = vpop.f32.mrb[0].mxu0
    %1856 = vdwg.mxu0
    %v1857 = vmax.f32 %v1643, 0.0
    %v1858 = vmax.f32 %v1645, 0.0
    %v1859 = vmax.f32 %v1854, 0.0
    %v1860 = vld [vmem:[#allocation11] sm:$0xff]
    %v1861 = vld [vmem:[#allocation11 + $0x8] sm:$0xff]
    %v1862 = vld [vmem:[#allocation11 + $0x10] sm:$0xff]
    %v1863 = vld [vmem:[#allocation11 + $0x18] sm:$0xff]
    %v1864 = vld [vmem:[#allocation11 + $0x20] sm:$0xff]
    %v1865 = vld [vmem:[#allocation11 + $0x28] sm:$0xff]
    %v1866 = vld [vmem:[#allocation11 + $0x30] sm:$0xff]
    %v1867 = vld [vmem:[#allocation11 + $0x38] sm:$0xff]
    %v1868 = vld [vmem:[#allocation11 + $0x40] sm:$0xff]
    %v1869 = vld [vmem:[#allocation11 + $0x48] sm:$0xff]
    %v1870 = vld [vmem:[#allocation11 + $0x50] sm:$0xff]
    %v1871 = vld [vmem:[#allocation11 + $0x58] sm:$0xff]
    %v1872 = vld [vmem:[#allocation11 + $0x60] sm:$0xff]
    %v1873 = vld [vmem:[#allocation11 + $0x68] sm:$0xff]
    %v1874 = vld [vmem:[#allocation11 + $0x70] sm:$0xff]
    %v1875 = vld [vmem:[#allocation11 + $0x78] sm:$0xff]
    %v1876 = vld [vmem:[#allocation11 + $0x80] sm:$0xff]
    %v1877 = vld [vmem:[#allocation11 + $0x88] sm:$0xff]
    %v1878 = vld [vmem:[#allocation11 + $0x90] sm:$0xff]
    %v1879 = vld [vmem:[#allocation11 + $0x98] sm:$0xff]
    %v1880 = vld [vmem:[#allocation11 + $0xa0] sm:$0xff]
    %v1881 = vld [vmem:[#allocation11 + $0xa8] sm:$0xff]
    %v1882 = vld [vmem:[#allocation11 + $0xb0] sm:$0xff]
    %v1883 = vld [vmem:[#allocation11 + $0xb8] sm:$0xff]
    %v1884 = vld [vmem:[#allocation11 + $0xc0] sm:$0xff]
    %v1885 = vld [vmem:[#allocation11 + $0xc8] sm:$0xff]
    %v1886 = vld [vmem:[#allocation11 + $0xd0] sm:$0xff]
    %v1887 = vld [vmem:[#allocation11 + $0xd8] sm:$0xff]
    %v1888 = vld [vmem:[#allocation11 + $0xe0] sm:$0xff]
    %v1889 = vld [vmem:[#allocation11 + $0xe8] sm:$0xff]
    %v1890 = vld [vmem:[#allocation11 + $0xf0] sm:$0xff]
    %v1891 = vld [vmem:[#allocation11 + $0xf8] sm:$0xff]
    %v1892 = vld [vmem:[#allocation11 + $0x100] sm:$0xff]
    %v1893 = vld [vmem:[#allocation11 + $0x108] sm:$0xff]
    %v1894 = vld [vmem:[#allocation11 + $0x110] sm:$0xff]
    %v1895 = vld [vmem:[#allocation11 + $0x118] sm:$0xff]
    %v1896 = vld [vmem:[#allocation11 + $0x120] sm:$0xff]
    %v1897 = vld [vmem:[#allocation11 + $0x128] sm:$0xff]
    %v1898 = vld [vmem:[#allocation11 + $0x130] sm:$0xff]
    %v1899 = vld [vmem:[#allocation11 + $0x138] sm:$0xff]
    %v1900 = vld [vmem:[#allocation13] sm:$0x1]
    %v1902 = vlaneseq
    %v1903 = vshrl.u32 %v1902, 7
    %v1904 = vsub.s32 0, %v1903
    %v1905 = vrot.slane %v1900, %v1904
    %vm1907 = vcmask 523264
    %v1909 = vsel %vm1907, %v1859, 0
    %1911 = vmatprep.subr.mxu0 0.0
    %1912 = vmatpush1.msra.mxu0 %v1860
    %1913 = vmatprep.subr.mxu0 0.0
    %1914 = vmatpush1.msra.mxu0 %v1861
    %1915 = vmatprep.subr.mxu0 0.0
    %1916 = vmatpush1.msra.mxu0 %v1862
    %1917 = vmatprep.subr.mxu0 0.0
    %1918 = vmatpush1.msra.mxu0 %v1863
    %1919 = vmatprep.subr.mxu0 0.0
    %1920 = vmatpush1.msra.mxu0 %v1864
    %1921 = vmatprep.subr.mxu0 0.0
    %1922 = vmatpush1.msra.mxu0 %v1865
    %1923 = vmatprep.subr.mxu0 0.0
    %1924 = vmatpush1.msra.mxu0 %v1866
    %1925 = vmatprep.subr.mxu0 0.0
    %1926 = vmatpush1.msra.mxu0 %v1867
    %1927 = vmatprep.subr.mxu0 0.0
    %1928 = vmatpush1.msra.mxu0 %v1868
    %1929 = vmatprep.subr.mxu0 0.0
    %1930 = vmatpush1.msra.mxu0 %v1869
    %1931 = vmatprep.subr.mxu0 0.0
    %1932 = vmatpush1.msra.mxu0 %v1870
    %1933 = vmatprep.subr.mxu0 0.0
    %1934 = vmatpush1.msra.mxu0 %v1871
    %1935 = vmatprep.subr.mxu0 0.0
    %1936 = vmatpush1.msra.mxu0 %v1872
    %1937 = vmatprep.subr.mxu0 0.0
    %1938 = vmatpush1.msra.mxu0 %v1873
    %1939 = vmatprep.subr.mxu0 0.0
    %1940 = vmatpush1.msra.mxu0 %v1874
    %1941 = vmatprep.subr.mxu0 0.0
    %1942 = vmatpush1.msra.mxu0 %v1875
    %1943 = vmatprep.subr.mxu0 0.0
    %1944 = vmatpush1.msra.mxu0 %v1876
    %1945 = vmatprep.subr.mxu0 0.0
    %1946 = vmatpush1.msra.mxu0 %v1877
    %1947 = vmatprep.subr.mxu0 0.0
    %1948 = vmatpush1.msra.mxu0 %v1878
    %1949 = vmatprep.subr.mxu0 0.0
    %1950 = vmatpush1.msra.mxu0 %v1879
    %1951 = vmatprep.subr.mxu0 0.0
    %1952 = vmatpush1.msra.mxu0 %v1880
    %1953 = vmatprep.subr.mxu0 0.0
    %1954 = vmatpush1.msra.mxu0 %v1881
    %1955 = vmatprep.subr.mxu0 0.0
    %1956 = vmatpush1.msra.mxu0 %v1882
    %1957 = vmatprep.subr.mxu0 0.0
    %1958 = vmatpush1.msra.mxu0 %v1883
    %1959 = vmatprep.subr.mxu0 0.0
    %1960 = vmatpush1.msra.mxu0 %v1884
    %1961 = vmatprep.subr.mxu0 0.0
    %1962 = vmatpush1.msra.mxu0 %v1885
    %1963 = vmatprep.subr.mxu0 0.0
    %1964 = vmatpush1.msra.mxu0 %v1886
    %1965 = vmatprep.subr.mxu0 0.0
    %1966 = vmatpush1.msra.mxu0 %v1887
    %1967 = vmatprep.subr.mxu0 0.0
    %1968 = vmatpush1.msra.mxu0 %v1888
    %1969 = vmatprep.subr.mxu0 0.0
    %1970 = vmatpush1.msra.mxu0 %v1889
    %1971 = vmatprep.subr.mxu0 0.0
    %1972 = vmatpush1.msra.mxu0 %v1890
    %1973 = vmatprep.subr.mxu0 0.0
    %1974 = vmatpush1.msra.mxu0 %v1891
    %1975 = vmatprep.mubr.f32.mxu0 %v1858
    %1976 = vmatmul.mubr.f32.gmra.mrb[0].mxu0 %v1857
    %v1977 = vpop.f32.mrb[0].mxu0
    %v1978 = vadd.f32 %v1905, %v1977
    %v1979 = vpop.f32.mrb[0].mxu0
    %1980 = vdwg.mxu0
    %1981 = vmatprep.subr.mxu0 0.0
    %1982 = vmatpush1.msra.mxu0 %v1892
    %1983 = vmatprep.subr.mxu0 0.0
    %1984 = vmatpush1.msra.mxu0 %v1893
    %1985 = vmatprep.subr.mxu0 0.0
    %1986 = vmatpush1.msra.mxu0 %v1894
    %1987 = vmatprep.subr.mxu0 0.0
    %1988 = vmatpush1.msra.mxu0 %v1895
    %1989 = vmatprep.subr.mxu0 0.0
    %1990 = vmatpush1.msra.mxu0 %v1896
    %1991 = vmatprep.subr.mxu0 0.0
    %1992 = vmatpush1.msra.mxu0 %v1897
    %1993 = vmatprep.subr.mxu0 0.0
    %1994 = vmatpush1.msra.mxu0 %v1898
    %1995 = vmatprep.subr.mxu0 0.0
    %1996 = vmatpush1.msra.mxu0 %v1899
    %1997 = vmatprep.subr.mxu0 0.0
    %1998 = vmatpush1.msra.mxu0 0.0
    %1999 = vmatprep.subr.mxu0 0.0
    %2000 = vmatpush1.msra.mxu0 0.0
    %2001 = vmatprep.subr.mxu0 0.0
    %2002 = vmatpush1.msra.mxu0 0.0
    %2003 = vmatprep.subr.mxu0 0.0
    %2004 = vmatpush1.msra.mxu0 0.0
    %2005 = vmatprep.subr.mxu0 0.0
    %2006 = vmatpush1.msra.mxu0 0.0
    %2007 = vmatprep.subr.mxu0 0.0
    %2008 = vmatpush1.msra.mxu0 0.0
    %2009 = vmatprep.subr.mxu0 0.0
    %2010 = vmatpush1.msra.mxu0 0.0
    %2011 = vmatprep.subr.mxu0 0.0
    %2012 = vmatpush1.msra.mxu0 0.0
    %2013 = vmatprep.subr.mxu0 0.0
    %2014 = vmatpush1.msra.mxu0 0.0
    %2015 = vmatprep.subr.mxu0 0.0
    %2016 = vmatpush1.msra.mxu0 0.0
    %2017 = vmatprep.subr.mxu0 0.0
    %2018 = vmatpush1.msra.mxu0 0.0
    %2019 = vmatprep.subr.mxu0 0.0
    %2020 = vmatpush1.msra.mxu0 0.0
    %2021 = vmatprep.subr.mxu0 0.0
    %2022 = vmatpush1.msra.mxu0 0.0
    %2023 = vmatprep.subr.mxu0 0.0
    %2024 = vmatpush1.msra.mxu0 0.0
    %2025 = vmatprep.subr.mxu0 0.0
    %2026 = vmatpush1.msra.mxu0 0.0
    %2027 = vmatprep.subr.mxu0 0.0
    %2028 = vmatpush1.msra.mxu0 0.0
    %2029 = vmatprep.subr.mxu0 0.0
    %2030 = vmatpush1.msra.mxu0 0.0
    %2031 = vmatprep.subr.mxu0 0.0
    %2032 = vmatpush1.msra.mxu0 0.0
    %2033 = vmatprep.subr.mxu0 0.0
    %2034 = vmatpush1.msra.mxu0 0.0
    %2035 = vmatprep.subr.mxu0 0.0
    %2036 = vmatpush1.msra.mxu0 0.0
    %2037 = vmatprep.subr.mxu0 0.0
    %2038 = vmatpush1.msra.mxu0 0.0
    %2039 = vmatprep.subr.mxu0 0.0
    %2040 = vmatpush1.msra.mxu0 0.0
    %2041 = vmatprep.subr.mxu0 0.0
    %2042 = vmatpush1.msra.mxu0 0.0
    %2043 = vmatprep.subr.mxu0 0.0
    %2044 = vmatpush1.msra.mxu0 0.0
    %2045 = vmatprep.mubr.f32.mxu0 0.0
    %2046 = vmatmul.mubr.f32.gmra.mrb[0].mxu0 %v1909
    %v2047 = vpop.f32.mrb[0].mxu0
    %v2048 = vadd.f32 %v1978, %v2047
    %v2049 = vpop.f32.mrb[0].mxu0
    %2050 = vdwg.mxu0
    %2051 = vst [vmem:[#allocation14] sm:$0xff] %v2048
    // Predicated region
    $region58: #{tpu_custom_call.1} parent=1 // pred_check
      _
    $region59: #{tpu_custom_call.1} parent=1 // pred_check_branch
      %2053 = sbr.rel (0) target = $region61
    $region60: #{tpu_custom_call.1} parent=1 // pred_region
      %s2055 = ssub.s32 128, 128
      %2056 = vsyncadd [#allocation4], %s2055
      %s2058 = sshll.u32 [#allocation14], 4
      %s2059 = int_to_ptr.vmem [resolvable:$true] %s2058
      %2061 = dma.vmem_to_hbm [thread:$0]  %s2059, 128, %s7, [#allocation4]
    $region61: #{tpu_custom_call.1} parent=1 // pred_fallthru
      _
    // Predicated region
    $region62: #{tpu_custom_call.1} parent=1 // pred_check
      _
    $region63: #{tpu_custom_call.1} parent=1 // pred_check_branch
      %2063 = sbr.rel (0) target = $region65
    $region64: #{tpu_custom_call.1} parent=1 // pred_region
      %2064 = dma.done [#allocation4], 128
    $region65: #{tpu_custom_call.1} parent=1 // pred_fallthru
      _
    %2065 = vsyncpa [#allocation3], 1
    %2066 = vsyncpa [#allocation6], 1
    %2067 = vsyncpa [#allocation9], 1
    %2068 = vsyncpa [#allocation12], 1
    %2069 = vsyncpa [#allocation4], 1

</llo_original>
